<compile_context>
chip_gen: v7x
topology: tpu7x:2x2x1
jax: 0.10.0
libtpu: 0.0.40
codegen_flags: <defaults>
</compile_context>

<pallas_src>
import math
from functools import partial

import jax
import jax.numpy as jnp
from jax.experimental import pallas as pl
from jax.experimental.pallas import tpu as pltpu


# ----------------------------------------------------------------------------
# helpers
# ----------------------------------------------------------------------------

_VMEM_LIMIT = 48 * 1024 * 1024  # fits v7x's 64 MiB VMEM with headroom; fine on v5e/v6e

_ROW_TILES = (256, 128, 64, 32, 16, 8)       # M (rows = B*T) tiles
_COL_TILES = (512, 384, 256, 128)            # N / K (channel) tiles
_SEQ_TILES = (256, 128, 64, 32, 16, 8)       # attention time tiles


def _round_up(x, m):
    return ((x + m - 1) // m) * m


def _pick_tile(dim, prefs):
    """Largest preferred tile that evenly divides dim, else the full dim."""
    for p in prefs:
        if dim >= p and dim % p == 0:
            return p
    return dim


def _cparams(sem):
    return pltpu.CompilerParams(
        dimension_semantics=sem, vmem_limit_bytes=_VMEM_LIMIT)


# ----------------------------------------------------------------------------
# Pallas kernels
# ----------------------------------------------------------------------------

def _ln_linear_kernel(x_ref, g_ref, b_ref, w_ref, bias_ref, o_ref, *, gelu):
    """o = [gelu_tanh](layernorm(x) @ w + bias). x block covers full K."""
    x = x_ref[...].astype(jnp.float32)                       # (tm, K)
    mean = jnp.mean(x, axis=-1, keepdims=True)
    var = jnp.mean(jnp.square(x - mean), axis=-1, keepdims=True)
    xn = (x - mean) * jax.lax.rsqrt(var + 1e-5)
    xn = xn * g_ref[...] + b_ref[...]
    acc = jnp.dot(xn.astype(jnp.bfloat16), w_ref[...].astype(jnp.bfloat16),
                  preferred_element_type=jnp.float32)        # (tm, tn)
    acc = acc + bias_ref[...]
    if gelu:
        c = 0.7978845608028654  # sqrt(2/pi), matches nn.GELU(approximate='tanh')
        acc = 0.5 * acc * (1.0 + jnp.tanh(c * (acc + 0.044715 * acc * acc * acc)))
    o_ref[...] = acc.astype(o_ref.dtype)


def _linear_resid_kernel(x_ref, w_ref, bias_ref, r_ref, o_ref, acc_ref):
    """o = x @ w + bias + residual, K-tiled with f32 VMEM accumulator."""
    @pl.when(pl.program_id(2) == 0)
    def _():
        acc_ref[...] = jnp.zeros_like(acc_ref)

    acc_ref[...] += jnp.dot(x_ref[...].astype(jnp.bfloat16),
                            w_ref[...].astype(jnp.bfloat16),
                            preferred_element_type=jnp.float32)

    @pl.when(pl.program_id(2) == pl.num_programs(2) - 1)
    def _():
        out = acc_ref[...] + bias_ref[...] + r_ref[...].astype(jnp.float32)
        o_ref[...] = out.astype(o_ref.dtype)


def _lnf_lmhead_kernel(x_ref, g_ref, b_ref, w_ref, o_ref):
    """o = layernorm(x) @ w.T with w kept as (vocab_tile, C) — no transpose copy."""
    x = x_ref[...].astype(jnp.float32)
    mean = jnp.mean(x, axis=-1, keepdims=True)
    var = jnp.mean(jnp.square(x - mean), axis=-1, keepdims=True)
    xn = (x - mean) * jax.lax.rsqrt(var + 1e-5)
    xn = xn * g_ref[...] + b_ref[...]
    acc = jax.lax.dot_general(
        xn.astype(jnp.bfloat16), w_ref[...].astype(jnp.bfloat16),
        dimension_numbers=(((1,), (1,)), ((), ())),
        preferred_element_type=jnp.float32)                  # (tm, tn_vocab)
    o_ref[...] = acc.astype(o_ref.dtype)


def _flash_attn_kernel(q_ref, k_ref, v_ref, o_ref, m_ref, l_ref, acc_ref, *, scale):
    """Causal online-softmax attention for one (batch*head, q_block) tile."""
    qi = pl.program_id(1)
    ki = pl.program_id(2)
    tq = q_ref.shape[1]
    tkv = k_ref.shape[1]

    @pl.when(ki == 0)
    def _():
        m_ref[...] = jnp.full_like(m_ref, -1e30)
        l_ref[...] = jnp.zeros_like(l_ref)
        acc_ref[...] = jnp.zeros_like(acc_ref)

    @pl.when(ki <= qi)                      # skip fully-masked kv blocks
    def _():
        q = q_ref[0].astype(jnp.bfloat16)   # (tq, hd)
        k = k_ref[0].astype(jnp.bfloat16)   # (tkv, hd)
        v = v_ref[0].astype(jnp.bfloat16)   # (tkv, hd)
        s = jax.lax.dot_general(q, k, (((1,), (1,)), ((), ())),
                                preferred_element_type=jnp.float32) * scale
        row = qi * tq + jax.lax.broadcasted_iota(jnp.int32, s.shape, 0)
        col = ki * tkv + jax.lax.broadcasted_iota(jnp.int32, s.shape, 1)
        s = jnp.where(col <= row, s, -1e30)
        m_prev = m_ref[...]
        m_new = jnp.maximum(m_prev, jnp.max(s, axis=-1, keepdims=True))
        alpha = jnp.exp(m_prev - m_new)
        p = jnp.exp(s - m_new)
        l_ref[...] = alpha * l_ref[...] + jnp.sum(p, axis=-1, keepdims=True)
        acc_ref[...] = alpha * acc_ref[...] + jnp.dot(
            p.astype(jnp.bfloat16), v, preferred_element_type=jnp.float32)
        m_ref[...] = m_new

    @pl.when(ki == qi)                      # last contributing block: finalize
    def _():
        inv = pl.reciprocal(l_ref[...], approx=True)
        o_ref[0] = (acc_ref[...] * inv).astype(o_ref.dtype)


# ----------------------------------------------------------------------------
# Pallas wrappers
# ----------------------------------------------------------------------------

def pallas_ln_linear(x2d, gamma, beta, w, bias, gelu=False):
    """layernorm + linear (+ optional tanh-GELU). x2d:(M,K), w:(K,N), bias:(N,)."""
    M, K = x2d.shape
    N = w.shape[1]
    tm = _pick_tile(M, _ROW_TILES)
    tn = _pick_tile(N, _COL_TILES)
    grid = (M // tm, N // tn)
    return pl.pallas_call(
        partial(_ln_linear_kernel, gelu=gelu),
        out_shape=jax.ShapeDtypeStruct((M, N), jnp.float32),
        grid=grid,
        in_specs=[
            pl.BlockSpec((tm, K), lambda i, j: (i, 0)),
            pl.BlockSpec((1, K), lambda i, j: (0, 0)),
            pl.BlockSpec((1, K), lambda i, j: (0, 0)),
            pl.BlockSpec((K, tn), lambda i, j: (0, j)),
            pl.BlockSpec((1, tn), lambda i, j: (0, j)),
        ],
        out_specs=pl.BlockSpec((tm, tn), lambda i, j: (i, j)),
        compiler_params=_cparams(("parallel", "parallel")),
    )(x2d, gamma.reshape(1, K), beta.reshape(1, K), w, bias.reshape(1, N))


def pallas_linear_residual(x2d, w, bias, resid):
    """x2d @ w + bias + resid with M/N/K tiling and f32 accumulator scratch."""
    M, K = x2d.shape
    N = w.shape[1]
    tm = _pick_tile(M, _ROW_TILES)
    tn = _pick_tile(N, _COL_TILES)
    tk = _pick_tile(K, _COL_TILES)
    grid = (M // tm, N // tn, K // tk)
    return pl.pallas_call(
        _linear_resid_kernel,
        out_shape=jax.ShapeDtypeStruct((M, N), jnp.float32),
        grid=grid,
        in_specs=[
            pl.BlockSpec((tm, tk), lambda i, j, k: (i, k)),
            pl.BlockSpec((tk, tn), lambda i, j, k: (k, j)),
            pl.BlockSpec((1, tn), lambda i, j, k: (0, j)),
            pl.BlockSpec((tm, tn), lambda i, j, k: (i, j)),
        ],
        out_specs=pl.BlockSpec((tm, tn), lambda i, j, k: (i, j)),
        scratch_shapes=[pltpu.VMEM((tm, tn), jnp.float32)],
        compiler_params=_cparams(("parallel", "parallel", "arbitrary")),
    )(x2d, w, bias.reshape(1, N), resid)


def pallas_lnf_lmhead(x2d, gamma, beta, wte):
    """final layernorm + tied lm_head. wte:(V_padded, C) contracted as x @ wte.T."""
    M, K = x2d.shape
    V = wte.shape[0]                      # already padded to a multiple of 128
    tm = _pick_tile(M, _ROW_TILES)
    tn = _pick_tile(V, _COL_TILES)
    grid = (M // tm, V // tn)
    return pl.pallas_call(
        _lnf_lmhead_kernel,
        out_shape=jax.ShapeDtypeStruct((M, V), jnp.float32),
        grid=grid,
        in_specs=[
            pl.BlockSpec((tm, K), lambda i, j: (i, 0)),
            pl.BlockSpec((1, K), lambda i, j: (0, 0)),
            pl.BlockSpec((1, K), lambda i, j: (0, 0)),
            pl.BlockSpec((tn, K), lambda i, j: (j, 0)),
        ],
        out_specs=pl.BlockSpec((tm, tn), lambda i, j: (i, j)),
        compiler_params=_cparams(("parallel", "parallel")),
    )(x2d, gamma.reshape(1, K), beta.reshape(1, K), wte)


def pallas_flash_attention(q, k, v):
    """q/k/v: (B*H, T, hd) -> (B*H, T, hd) causal flash attention."""
    BH, T, hd = q.shape
    tq = _pick_tile(T, _SEQ_TILES)
    tkv = tq
    grid = (BH, T // tq, T // tkv)
    scale = 1.0 / math.sqrt(hd)
    q_map = lambda b, i, j: (b, i, 0)
    # Clamp the kv block index so skipped (fully masked) blocks are not re-DMA'd.
    kv_map = lambda b, i, j: (b, jnp.minimum(j, i), 0)
    return pl.pallas_call(
        partial(_flash_attn_kernel, scale=scale),
        out_shape=jax.ShapeDtypeStruct((BH, T, hd), jnp.float32),
        grid=grid,
        in_specs=[
            pl.BlockSpec((1, tq, hd), q_map),
            pl.BlockSpec((1, tkv, hd), kv_map),
            pl.BlockSpec((1, tkv, hd), kv_map),
        ],
        out_specs=pl.BlockSpec((1, tq, hd), q_map),
        scratch_shapes=[
            pltpu.VMEM((tq, 1), jnp.float32),    # running max m
            pltpu.VMEM((tq, 1), jnp.float32),    # running sum l
            pltpu.VMEM((tq, hd), jnp.float32),   # output accumulator
        ],
        compiler_params=_cparams(("parallel", "parallel", "arbitrary")),
    )(q, k, v)


# ----------------------------------------------------------------------------
# Parameter init (mirrors GPT2._init_weights, deterministic)
# ----------------------------------------------------------------------------

def init_params(key, vocab_size, block_size, n_layer, n_head, n_embd):
    std = 0.02
    proj_std = 0.02 * (2 * n_layer) ** (-0.5)        # NANOGPT_SCALE_INIT
    vpad = _round_up(vocab_size, 128)                # lane-dense lm_head output
    keys = iter(jax.random.split(key, 2 + 4 * n_layer))

    def nrm(k, shape, s, dtype=jnp.float32):
        return (jax.random.normal(k, shape, dtype=jnp.float32) * s).astype(dtype)

    wte = nrm(next(keys), (vocab_size, n_embd), std)
    wte = jnp.pad(wte, ((0, vpad - vocab_size), (0, 0)))      # pad once, at init

    params = {
        "wte": wte,                                           # (vpad, C), tied lm_head
        "wpe": nrm(next(keys), (block_size, n_embd), std),
        "ln_f_g": jnp.ones((n_embd,), jnp.float32),
        "ln_f_b": jnp.zeros((n_embd,), jnp.float32),
        "blocks": [],
    }
    for _ in range(n_layer):
        blk = {
            "ln1_g": jnp.ones((n_embd,), jnp.float32),
            "ln1_b": jnp.zeros((n_embd,), jnp.float32),
            "ln2_g": jnp.ones((n_embd,), jnp.float32),
            "ln2_b": jnp.zeros((n_embd,), jnp.float32),
            # Linear weights stored (in, out), in bf16 to halve HBM/VMEM traffic.
            "attn_w_qkv": nrm(next(keys), (n_embd, 3 * n_embd), std, jnp.bfloat16),
            "attn_b_qkv": jnp.zeros((3 * n_embd,), jnp.float32),
            "attn_w_proj": nrm(next(keys), (n_embd, n_embd), proj_std, jnp.bfloat16),
            "attn_b_proj": jnp.zeros((n_embd,), jnp.float32),
            "mlp_w_fc": nrm(next(keys), (n_embd, 4 * n_embd), std, jnp.bfloat16),
            "mlp_b_fc": jnp.zeros((4 * n_embd,), jnp.float32),
            "mlp_w_proj": nrm(next(keys), (4 * n_embd, n_embd), proj_std, jnp.bfloat16),
            "mlp_b_proj": jnp.zeros((n_embd,), jnp.float32),
        }
        params["blocks"].append(blk)
    return params


# ----------------------------------------------------------------------------
# Forward pass
# ----------------------------------------------------------------------------

def gpt2_forward(params, idx, *, n_head, vocab_size):
    B, T = idx.shape
    C = params["wte"].shape[1]
    hd = C // n_head

    # Embedding gather (glue, plain JAX).
    tok_emb = jnp.take(params["wte"], idx, axis=0)            # (B, T, C)
    pos_emb = params["wpe"][:T]                               # (T, C)
    x2d = (tok_emb + pos_emb[None, :, :]).reshape(B * T, C)   # (BT, C) f32 residual

    for blk in params["blocks"]:
        # ---- attention branch: fused LN1 + QKV, flash attention, proj+residual ----
        qkv = pallas_ln_linear(x2d, blk["ln1_g"], blk["ln1_b"],
                               blk["attn_w_qkv"], blk["attn_b_qkv"])   # (BT, 3C)
        q, k, v = jnp.split(qkv, 3, axis=-1)

        def to_heads(t):
            return (t.reshape(B, T, n_head, hd).transpose(0, 2, 1, 3)
                     .reshape(B * n_head, T, hd))

        # TODO(synk): head split/merge transposes still handled by XLA outside Pallas.
        y = pallas_flash_attention(to_heads(q), to_heads(k), to_heads(v))
        y = (y.reshape(B, n_head, T, hd).transpose(0, 2, 1, 3)
              .reshape(B * T, C))
        x2d = pallas_linear_residual(y, blk["attn_w_proj"], blk["attn_b_proj"], x2d)

        # ---- MLP branch: fused LN2 + FC + GELU, proj+residual ----
        h = pallas_ln_linear(x2d, blk["ln2_g"], blk["ln2_b"],
                             blk["mlp_w_fc"], blk["mlp_b_fc"], gelu=True)
        x2d = pallas_linear_residual(h, blk["mlp_w_proj"], blk["mlp_b_proj"], x2d)

    # Final layernorm fused with the tied lm_head (no wte.T materialization).
    logits = pallas_lnf_lmhead(x2d, params["ln_f_g"], params["ln_f_b"], params["wte"])
    if logits.shape[1] != vocab_size:
        logits = logits[:, :vocab_size]
    # TODO(synk): cross-entropy loss path (targets) not implemented; returns logits only.
    return logits.reshape(B, T, vocab_size)


# ----------------------------------------------------------------------------
# Main
# ----------------------------------------------------------------------------

if __name__ == "__main__":
    # Small GPT-2 config (consistent with the module's structure).
    vocab_size = 128
    block_size = 16
    n_layer = 2
    n_head = 4
    n_embd = 32
    B, T = 2, 8

    key = jax.random.PRNGKey(0)
    pkey, ikey = jax.random.split(key)
    params = init_params(pkey, vocab_size, block_size, n_layer, n_head, n_embd)
    idx = jax.random.randint(ikey, (B, T), 0, vocab_size, dtype=jnp.int32)

    fwd = jax.jit(partial(gpt2_forward, n_head=n_head, vocab_size=vocab_size))
    logits = fwd(params, idx)
    jax.block_until_ready(logits)
    assert logits.shape == (B, T, vocab_size)
    assert bool(jnp.isfinite(logits).all())
    print("KERNEL_OK")
</pallas_src>

<mosaic_0001>
module attributes {stable_mosaic.version = 11 : i64} {
  func.func @_ln_linear_kernel(%arg0: i32, %arg1: i32, %arg2: memref<16x32xf32, #tpu.memory_space<vmem>>, %arg3: memref<1x32xf32, #tpu.memory_space<vmem>>, %arg4: memref<1x32xf32, #tpu.memory_space<vmem>>, %arg5: memref<32x96xbf16, #tpu.memory_space<vmem>>, %arg6: memref<1x96xf32, #tpu.memory_space<vmem>>, %arg7: memref<16x96xf32, #tpu.memory_space<vmem>>) attributes {dimension_semantics = [#tpu.dimension_semantics<parallel>, #tpu.dimension_semantics<parallel>], iteration_bounds = array<i64: 1, 1>, scalar_prefetch = 0 : i64, scratch_operands = 0 : i64, tpu.core_type = #tpu.core_type<tc>, window_params = [{transform_indices = @transform_0, window_bounds = array<i64: 16, 32>}, {pipeline_mode = #tpu.pipeline_mode<synchronous>, transform_indices = @transform_1, window_bounds = array<i64: 1, 32>}, {pipeline_mode = #tpu.pipeline_mode<synchronous>, transform_indices = @transform_2, window_bounds = array<i64: 1, 32>}, {transform_indices = @transform_3, window_bounds = array<i64: 32, 96>}, {transform_indices = @transform_4, window_bounds = array<i64: 1, 96>}, {transform_indices = @transform_5, window_bounds = array<i64: 16, 96>}]} {
    %c0 = arith.constant 0 : index
    %c0_0 = arith.constant 0 : index
    %0 = vector.load %arg2[%c0, %c0_0] : memref<16x32xf32, #tpu.memory_space<vmem>>, vector<16x32xf32>
    %cst = arith.constant dense<0.000000e+00> : vector<16xf32>
    %1 = vector.multi_reduction <add>, %0, %cst [1] : vector<16x32xf32> to vector<16xf32>
    %2 = vector.shape_cast %1 : vector<16xf32> to vector<16x1xf32>
    %cst_1 = arith.constant 3.200000e+01 : f32
    %3 = vector.broadcast %cst_1 : f32 to vector<16x1xf32>
    %4 = arith.divf %2, %3 : vector<16x1xf32>
    %5 = vector.broadcast %4 : vector<16x1xf32> to vector<16x32xf32>
    %6 = arith.subf %0, %5 : vector<16x32xf32>
    %7 = arith.mulf %6, %6 : vector<16x32xf32>
    %cst_2 = arith.constant dense<0.000000e+00> : vector<16xf32>
    %8 = vector.multi_reduction <add>, %7, %cst_2 [1] : vector<16x32xf32> to vector<16xf32>
    %9 = vector.shape_cast %8 : vector<16xf32> to vector<16x1xf32>
    %cst_3 = arith.constant 3.200000e+01 : f32
    %10 = vector.broadcast %cst_3 : f32 to vector<16x1xf32>
    %11 = arith.divf %9, %10 : vector<16x1xf32>
    %12 = vector.broadcast %4 : vector<16x1xf32> to vector<16x32xf32>
    %13 = arith.subf %0, %12 : vector<16x32xf32>
    %cst_4 = arith.constant 9.99999974E-6 : f32
    %14 = vector.broadcast %cst_4 : f32 to vector<16x1xf32>
    %15 = arith.addf %11, %14 : vector<16x1xf32>
    %16 = math.rsqrt %15 : vector<16x1xf32>
    %17 = vector.broadcast %16 : vector<16x1xf32> to vector<16x32xf32>
    %18 = arith.mulf %13, %17 : vector<16x32xf32>
    %c0_5 = arith.constant 0 : index
    %c0_6 = arith.constant 0 : index
    %19 = vector.load %arg3[%c0_5, %c0_6] : memref<1x32xf32, #tpu.memory_space<vmem>>, vector<1x32xf32>
    %20 = vector.broadcast %19 : vector<1x32xf32> to vector<16x32xf32>
    %21 = arith.mulf %18, %20 : vector<16x32xf32>
    %c0_7 = arith.constant 0 : index
    %c0_8 = arith.constant 0 : index
    %22 = vector.load %arg4[%c0_7, %c0_8] : memref<1x32xf32, #tpu.memory_space<vmem>>, vector<1x32xf32>
    %23 = vector.broadcast %22 : vector<1x32xf32> to vector<16x32xf32>
    %24 = arith.addf %21, %23 : vector<16x32xf32>
    %25 = arith.truncf %24 : vector<16x32xf32> to vector<16x32xbf16>
    %c0_9 = arith.constant 0 : index
    %c0_10 = arith.constant 0 : index
    %26 = vector.load %arg5[%c0_9, %c0_10] : memref<32x96xbf16, #tpu.memory_space<vmem>>, vector<32x96xbf16>
    %cst_11 = arith.constant dense<0.000000e+00> : vector<16x96xf32>
    %27 = tpu.matmul %25, %26, %cst_11 {dimension_numbers = #tpu.dot_dimension_numbers<[1], [0], [0], [1], [0, 0, 1, 1], [], []>} : vector<16x32xbf16>, vector<32x96xbf16>, vector<16x96xf32> -> vector<16x96xf32>
    %c0_12 = arith.constant 0 : index
    %c0_13 = arith.constant 0 : index
    %28 = vector.load %arg6[%c0_12, %c0_13] : memref<1x96xf32, #tpu.memory_space<vmem>>, vector<1x96xf32>
    %29 = vector.broadcast %28 : vector<1x96xf32> to vector<16x96xf32>
    %30 = arith.addf %27, %29 : vector<16x96xf32>
    %c0_14 = arith.constant 0 : index
    %c0_15 = arith.constant 0 : index
    %31 = vector.load %arg7[%c0_14, %c0_15] : memref<16x96xf32, #tpu.memory_space<vmem>>, vector<16x96xf32>
    tpu.vector_store %arg7[%c0_14, %c0_15], %30 {strides = array<i32>} : memref<16x96xf32, #tpu.memory_space<vmem>>, vector<16x96xf32>,
    return
  }
  func.func @transform_0(%arg0: i32, %arg1: i32) -> (i32, i32) {
    %c0_i32 = arith.constant 0 : i32
    %c0_i32_0 = arith.constant 0 : i32
    return %arg0, %c0_i32 : i32, i32
  }
  func.func @transform_1(%arg0: i32, %arg1: i32) -> (i32, i32) {
    %c0_i32 = arith.constant 0 : i32
    %c0_i32_0 = arith.constant 0 : i32
    %c0_i32_1 = arith.constant 0 : i32
    return %c0_i32, %c0_i32_0 : i32, i32
  }
  func.func @transform_2(%arg0: i32, %arg1: i32) -> (i32, i32) {
    %c0_i32 = arith.constant 0 : i32
    %c0_i32_0 = arith.constant 0 : i32
    %c0_i32_1 = arith.constant 0 : i32
    return %c0_i32, %c0_i32_0 : i32, i32
  }
  func.func @transform_3(%arg0: i32, %arg1: i32) -> (i32, i32) {
    %c0_i32 = arith.constant 0 : i32
    %c0_i32_0 = arith.constant 0 : i32
    return %c0_i32, %arg1 : i32, i32
  }
  func.func @transform_4(%arg0: i32, %arg1: i32) -> (i32, i32) {
    %c0_i32 = arith.constant 0 : i32
    %c0_i32_0 = arith.constant 0 : i32
    return %c0_i32, %arg1 : i32, i32
  }
  func.func @transform_5(%arg0: i32, %arg1: i32) -> (i32, i32) {
    %c0_i32 = arith.constant 0 : i32
    return %arg0, %arg1 : i32, i32
  }
}

module attributes {stable_mosaic.version = 11 : i64} {
  func.func @_flash_attn_kernel(%arg0: i32, %arg1: i32, %arg2: i32, %arg3: memref<1x8x8xf32, #tpu.memory_space<vmem>>, %arg4: memref<1x8x8xf32, #tpu.memory_space<vmem>>, %arg5: memref<1x8x8xf32, #tpu.memory_space<vmem>>, %arg6: memref<1x8x8xf32, #tpu.memory_space<vmem>>, %arg7: memref<8x1xf32, #tpu.memory_space<vmem>>, %arg8: memref<8x1xf32, #tpu.memory_space<vmem>>, %arg9: memref<8x8xf32, #tpu.memory_space<vmem>>) attributes {dimension_semantics = [#tpu.dimension_semantics<parallel>, #tpu.dimension_semantics<parallel>, #tpu.dimension_semantics<arbitrary>], iteration_bounds = array<i64: 8, 1, 1>, scalar_prefetch = 0 : i64, scratch_operands = 3 : i64, tpu.core_type = #tpu.core_type<tc>, window_params = [{transform_indices = @transform_0, window_bounds = array<i64: 1, 8, 8>}, {transform_indices = @transform_1, window_bounds = array<i64: 1, 8, 8>}, {transform_indices = @transform_2, window_bounds = array<i64: 1, 8, 8>}, {transform_indices = @transform_3, window_bounds = array<i64: 1, 8, 8>}]} {
    %c0_i32 = arith.constant 0 : i32
    %0 = arith.cmpi eq, %arg2, %c0_i32 : i32
    %1 = arith.extui %0 : i1 to i32
    %c0_i32_0 = arith.constant 0 : i32
    %2 = arith.cmpi ne, %1, %c0_i32_0 : i32
    scf.if %2 {
      %cst = arith.constant -1.000000e+30 : f32
      %9 = vector.broadcast %cst : f32 to vector<8x1xf32>
      %c0 = arith.constant 0 : index
      %c0_3 = arith.constant 0 : index
      %10 = vector.load %arg7[%c0, %c0_3] : memref<8x1xf32, #tpu.memory_space<vmem>>, vector<8x1xf32>
      tpu.vector_store %arg7[%c0, %c0_3], %9 {strides = array<i32>} : memref<8x1xf32, #tpu.memory_space<vmem>>, vector<8x1xf32>,
      %cst_4 = arith.constant 0.000000e+00 : f32
      %11 = vector.broadcast %cst_4 : f32 to vector<8x1xf32>
      %c0_5 = arith.constant 0 : index
      %c0_6 = arith.constant 0 : index
      %12 = vector.load %arg8[%c0_5, %c0_6] : memref<8x1xf32, #tpu.memory_space<vmem>>, vector<8x1xf32>
      tpu.vector_store %arg8[%c0_5, %c0_6], %11 {strides = array<i32>} : memref<8x1xf32, #tpu.memory_space<vmem>>, vector<8x1xf32>,
      %cst_7 = arith.constant 0.000000e+00 : f32
      %13 = vector.broadcast %cst_7 : f32 to vector<8x8xf32>
      %c0_8 = arith.constant 0 : index
      %c0_9 = arith.constant 0 : index
      %14 = vector.load %arg9[%c0_8, %c0_9] : memref<8x8xf32, #tpu.memory_space<vmem>>, vector<8x8xf32>
      tpu.vector_store %arg9[%c0_8, %c0_9], %13 {strides = array<i32>} : memref<8x8xf32, #tpu.memory_space<vmem>>, vector<8x8xf32>,
    } else {
    }
    %3 = arith.cmpi sle, %arg2, %arg1 : i32
    %4 = arith.extui %3 : i1 to i32
    %c0_i32_1 = arith.constant 0 : i32
    %5 = arith.cmpi ne, %4, %c0_i32_1 : i32
    scf.if %5 {
      %c0 = arith.constant 0 : index
      %c0_3 = arith.constant 0 : index
      %c0_4 = arith.constant 0 : index
      %9 = vector.load %arg3[%c0, %c0_3, %c0_4] : memref<1x8x8xf32, #tpu.memory_space<vmem>>, vector<1x8x8xf32>
      %10 = vector.shape_cast %9 : vector<1x8x8xf32> to vector<8x8xf32>
      %11 = arith.truncf %10 : vector<8x8xf32> to vector<8x8xbf16>
      %c0_5 = arith.constant 0 : index
      %c0_6 = arith.constant 0 : index
      %c0_7 = arith.constant 0 : index
      %12 = vector.load %arg4[%c0_5, %c0_6, %c0_7] : memref<1x8x8xf32, #tpu.memory_space<vmem>>, vector<1x8x8xf32>
      %13 = vector.shape_cast %12 : vector<1x8x8xf32> to vector<8x8xf32>
      %14 = arith.truncf %13 : vector<8x8xf32> to vector<8x8xbf16>
      %c0_8 = arith.constant 0 : index
      %c0_9 = arith.constant 0 : index
      %c0_10 = arith.constant 0 : index
      %15 = vector.load %arg5[%c0_8, %c0_9, %c0_10] : memref<1x8x8xf32, #tpu.memory_space<vmem>>, vector<1x8x8xf32>
      %16 = vector.shape_cast %15 : vector<1x8x8xf32> to vector<8x8xf32>
      %17 = arith.truncf %16 : vector<8x8xf32> to vector<8x8xbf16>
      %cst = arith.constant dense<0.000000e+00> : vector<8x8xf32>
      %18 = tpu.matmul %11, %14, %cst {dimension_numbers = #tpu.dot_dimension_numbers<[1], [1], [0], [0], [0, 0, 1, 0], [], []>} : vector<8x8xbf16>, vector<8x8xbf16>, vector<8x8xf32> -> vector<8x8xf32>
      %cst_11 = arith.constant 0.353553385 : f32
      %19 = vector.broadcast %cst_11 : f32 to vector<8x8xf32>
      %20 = arith.mulf %18, %19 : vector<8x8xf32>
      %c8_i32 = arith.constant 8 : i32
      %21 = arith.muli %arg1, %c8_i32 : i32
      %22 = tpu.iota {dimensions = array<i32: 0>} : vector<8x8xi32>
      %23 = vector.broadcast %21 : i32 to vector<8x8xi32>
      %24 = arith.addi %23, %22 : vector<8x8xi32>
      %c8_i32_12 = arith.constant 8 : i32
      %25 = arith.muli %arg2, %c8_i32_12 : i32
      %26 = tpu.iota {dimensions = array<i32: 1>} : vector<8x8xi32>
      %27 = vector.broadcast %25 : i32 to vector<8x8xi32>
      %28 = arith.addi %27, %26 : vector<8x8xi32>
      %29 = arith.cmpi sle, %28, %24 : vector<8x8xi32>
      %cst_13 = arith.constant -1.000000e+30 : f32
      %30 = vector.broadcast %cst_13 : f32 to vector<8x8xf32>
      %31 = arith.select %29, %20, %30 : vector<8x8xi1>, vector<8x8xf32>
      %c0_14 = arith.constant 0 : index
      %c0_15 = arith.constant 0 : index
      %32 = vector.load %arg7[%c0_14, %c0_15] : memref<8x1xf32, #tpu.memory_space<vmem>>, vector<8x1xf32>
      %cst_16 = arith.constant dense<0xFF800000> : vector<8xf32>
      %33 = vector.multi_reduction <maximumf>, %31, %cst_16 [1] : vector<8x8xf32> to vector<8xf32>
      %34 = vector.shape_cast %33 : vector<8xf32> to vector<8x1xf32>
      %35 = arith.maximumf %32, %34 : vector<8x1xf32>
      %36 = arith.subf %32, %35 : vector<8x1xf32>
      %37 = math.exp %36 : vector<8x1xf32>
      %38 = vector.broadcast %35 : vector<8x1xf32> to vector<8x8xf32>
      %39 = arith.subf %31, %38 : vector<8x8xf32>
      %40 = math.exp %39 : vector<8x8xf32>
      %c0_17 = arith.constant 0 : index
      %c0_18 = arith.constant 0 : index
      %41 = vector.load %arg8[%c0_17, %c0_18] : memref<8x1xf32, #tpu.memory_space<vmem>>, vector<8x1xf32>
      %42 = arith.mulf %37, %41 : vector<8x1xf32>
      %cst_19 = arith.constant dense<0.000000e+00> : vector<8xf32>
      %43 = vector.multi_reduction <add>, %40, %cst_19 [1] : vector<8x8xf32> to vector<8xf32>
      %44 = vector.shape_cast %43 : vector<8xf32> to vector<8x1xf32>
      %45 = arith.addf %42, %44 : vector<8x1xf32>
      %c0_20 = arith.constant 0 : index
      %c0_21 = arith.constant 0 : index
      %46 = vector.load %arg8[%c0_20, %c0_21] : memref<8x1xf32, #tpu.memory_space<vmem>>, vector<8x1xf32>
      tpu.vector_store %arg8[%c0_20, %c0_21], %45 {strides = array<i32>} : memref<8x1xf32, #tpu.memory_space<vmem>>, vector<8x1xf32>,
      %c0_22 = arith.constant 0 : index
      %c0_23 = arith.constant 0 : index
      %47 = vector.load %arg9[%c0_22, %c0_23] : memref<8x8xf32, #tpu.memory_space<vmem>>, vector<8x8xf32>
      %48 = vector.broadcast %37 : vector<8x1xf32> to vector<8x8xf32>
      %49 = arith.mulf %48, %47 : vector<8x8xf32>
      %50 = arith.truncf %40 : vector<8x8xf32> to vector<8x8xbf16>
      %cst_24 = arith.constant dense<0.000000e+00> : vector<8x8xf32>
      %51 = tpu.matmul %50, %17, %cst_24 {dimension_numbers = #tpu.dot_dimension_numbers<[1], [0], [0], [1], [0, 0, 1, 1], [], []>} : vector<8x8xbf16>, vector<8x8xbf16>, vector<8x8xf32> -> vector<8x8xf32>
      %52 = arith.addf %49, %51 : vector<8x8xf32>
      %c0_25 = arith.constant 0 : index
      %c0_26 = arith.constant 0 : index
      %53 = vector.load %arg9[%c0_25, %c0_26] : memref<8x8xf32, #tpu.memory_space<vmem>>, vector<8x8xf32>
      tpu.vector_store %arg9[%c0_25, %c0_26], %52 {strides = array<i32>} : memref<8x8xf32, #tpu.memory_space<vmem>>, vector<8x8xf32>,
      %c0_27 = arith.constant 0 : index
      %c0_28 = arith.constant 0 : index
      %54 = vector.load %arg7[%c0_27, %c0_28] : memref<8x1xf32, #tpu.memory_space<vmem>>, vector<8x1xf32>
      tpu.vector_store %arg7[%c0_27, %c0_28], %35 {strides = array<i32>} : memref<8x1xf32, #tpu.memory_space<vmem>>, vector<8x1xf32>,
    } else {
    }
    %6 = arith.cmpi eq, %arg2, %arg1 : i32
    %7 = arith.extui %6 : i1 to i32
    %c0_i32_2 = arith.constant 0 : i32
    %8 = arith.cmpi ne, %7, %c0_i32_2 : i32
    scf.if %8 {
      %c0 = arith.constant 0 : index
      %c0_3 = arith.constant 0 : index
      %9 = vector.load %arg8[%c0, %c0_3] : memref<8x1xf32, #tpu.memory_space<vmem>>, vector<8x1xf32>
      %10 = tpu.reciprocal %9 {approx = true} : vector<8x1xf32> -> vector<8x1xf32>
      %c0_4 = arith.constant 0 : index
      %c0_5 = arith.constant 0 : index
      %11 = vector.load %arg9[%c0_4, %c0_5] : memref<8x8xf32, #tpu.memory_space<vmem>>, vector<8x8xf32>
      %12 = vector.broadcast %10 : vector<8x1xf32> to vector<8x8xf32>
      %13 = arith.mulf %11, %12 : vector<8x8xf32>
      %c0_6 = arith.constant 0 : index
      %c0_7 = arith.constant 0 : index
      %c0_8 = arith.constant 0 : index
      %14 = vector.load %arg6[%c0_6, %c0_7, %c0_8] : memref<1x8x8xf32, #tpu.memory_space<vmem>>, vector<1x8x8xf32>
      %15 = vector.shape_cast %14 : vector<1x8x8xf32> to vector<8x8xf32>
      %16 = vector.shape_cast %13 : vector<8x8xf32> to vector<1x8x8xf32>
      tpu.vector_store %arg6[%c0_6, %c0_7, %c0_8], %16 {strides = array<i32>} : memref<1x8x8xf32, #tpu.memory_space<vmem>>, vector<1x8x8xf32>,
    } else {
    }
    return
  }
  func.func @transform_0(%arg0: i32, %arg1: i32, %arg2: i32) -> (i32, i32, i32) {
    %c0_i32 = arith.constant 0 : i32
    %c0_i32_0 = arith.constant 0 : i32
    return %arg0, %arg1, %c0_i32 : i32, i32, i32
  }
  func.func @transform_1(%arg0: i32, %arg1: i32, %arg2: i32) -> (i32, i32, i32) {
    %0 = arith.minsi %arg2, %arg1 : i32
    %c0_i32 = arith.constant 0 : i32
    %c0_i32_0 = arith.constant 0 : i32
    return %arg0, %0, %c0_i32 : i32, i32, i32
  }
  func.func @transform_2(%arg0: i32, %arg1: i32, %arg2: i32) -> (i32, i32, i32) {
    %0 = arith.minsi %arg2, %arg1 : i32
    %c0_i32 = arith.constant 0 : i32
    %c0_i32_0 = arith.constant 0 : i32
    return %arg0, %0, %c0_i32 : i32, i32, i32
  }
  func.func @transform_3(%arg0: i32, %arg1: i32, %arg2: i32) -> (i32, i32, i32) {
    %c0_i32 = arith.constant 0 : i32
    %c0_i32_0 = arith.constant 0 : i32
    return %arg0, %arg1, %c0_i32 : i32, i32, i32
  }
}

module attributes {stable_mosaic.version = 11 : i64} {
  func.func @_linear_resid_kernel(%arg0: i32, %arg1: i32, %arg2: i32, %arg3: memref<16x32xf32, #tpu.memory_space<vmem>>, %arg4: memref<32x32xbf16, #tpu.memory_space<vmem>>, %arg5: memref<1x32xf32, #tpu.memory_space<vmem>>, %arg6: memref<16x32xf32, #tpu.memory_space<vmem>>, %arg7: memref<16x32xf32, #tpu.memory_space<vmem>>, %arg8: memref<16x32xf32, #tpu.memory_space<vmem>>) attributes {dimension_semantics = [#tpu.dimension_semantics<parallel>, #tpu.dimension_semantics<parallel>, #tpu.dimension_semantics<arbitrary>], iteration_bounds = array<i64: 1, 1, 1>, scalar_prefetch = 0 : i64, scratch_operands = 1 : i64, tpu.core_type = #tpu.core_type<tc>, window_params = [{transform_indices = @transform_0, window_bounds = array<i64: 16, 32>}, {transform_indices = @transform_1, window_bounds = array<i64: 32, 32>}, {transform_indices = @transform_2, window_bounds = array<i64: 1, 32>}, {transform_indices = @transform_3, window_bounds = array<i64: 16, 32>}, {transform_indices = @transform_4, window_bounds = array<i64: 16, 32>}]} {
    %c0_i32 = arith.constant 0 : i32
    %0 = arith.cmpi eq, %arg2, %c0_i32 : i32
    %1 = arith.extui %0 : i1 to i32
    %c0_i32_0 = arith.constant 0 : i32
    %2 = arith.cmpi ne, %1, %c0_i32_0 : i32
    scf.if %2 {
      %cst_10 = arith.constant 0.000000e+00 : f32
      %13 = vector.broadcast %cst_10 : f32 to vector<16x32xf32>
      %c0_11 = arith.constant 0 : index
      %c0_12 = arith.constant 0 : index
      %14 = vector.load %arg8[%c0_11, %c0_12] : memref<16x32xf32, #tpu.memory_space<vmem>>, vector<16x32xf32>
      tpu.vector_store %arg8[%c0_11, %c0_12], %13 {strides = array<i32>} : memref<16x32xf32, #tpu.memory_space<vmem>>, vector<16x32xf32>,
    } else {
    }
    %c0 = arith.constant 0 : index
    %c0_1 = arith.constant 0 : index
    %3 = vector.load %arg8[%c0, %c0_1] : memref<16x32xf32, #tpu.memory_space<vmem>>, vector<16x32xf32>
    %c0_2 = arith.constant 0 : index
    %c0_3 = arith.constant 0 : index
    %4 = vector.load %arg3[%c0_2, %c0_3] : memref<16x32xf32, #tpu.memory_space<vmem>>, vector<16x32xf32>
    %5 = arith.truncf %4 : vector<16x32xf32> to vector<16x32xbf16>
    %c0_4 = arith.constant 0 : index
    %c0_5 = arith.constant 0 : index
    %6 = vector.load %arg4[%c0_4, %c0_5] : memref<32x32xbf16, #tpu.memory_space<vmem>>, vector<32x32xbf16>
    %cst = arith.constant dense<0.000000e+00> : vector<16x32xf32>
    %7 = tpu.matmul %5, %6, %cst {dimension_numbers = #tpu.dot_dimension_numbers<[1], [0], [0], [1], [0, 0, 1, 1], [], []>} : vector<16x32xbf16>, vector<32x32xbf16>, vector<16x32xf32> -> vector<16x32xf32>
    %8 = arith.addf %3, %7 : vector<16x32xf32>
    %c0_6 = arith.constant 0 : index
    %c0_7 = arith.constant 0 : index
    %9 = vector.load %arg8[%c0_6, %c0_7] : memref<16x32xf32, #tpu.memory_space<vmem>>, vector<16x32xf32>
    tpu.vector_store %arg8[%c0_6, %c0_7], %8 {strides = array<i32>} : memref<16x32xf32, #tpu.memory_space<vmem>>, vector<16x32xf32>,
    %c0_i32_8 = arith.constant 0 : i32
    %10 = arith.cmpi eq, %arg2, %c0_i32_8 : i32
    %11 = arith.extui %10 : i1 to i32
    %c0_i32_9 = arith.constant 0 : i32
    %12 = arith.cmpi ne, %11, %c0_i32_9 : i32
    scf.if %12 {
      %c0_10 = arith.constant 0 : index
      %c0_11 = arith.constant 0 : index
      %13 = vector.load %arg8[%c0_10, %c0_11] : memref<16x32xf32, #tpu.memory_space<vmem>>, vector<16x32xf32>
      %c0_12 = arith.constant 0 : index
      %c0_13 = arith.constant 0 : index
      %14 = vector.load %arg5[%c0_12, %c0_13] : memref<1x32xf32, #tpu.memory_space<vmem>>, vector<1x32xf32>
      %15 = vector.broadcast %14 : vector<1x32xf32> to vector<16x32xf32>
      %16 = arith.addf %13, %15 : vector<16x32xf32>
      %c0_14 = arith.constant 0 : index
      %c0_15 = arith.constant 0 : index
      %17 = vector.load %arg6[%c0_14, %c0_15] : memref<16x32xf32, #tpu.memory_space<vmem>>, vector<16x32xf32>
      %18 = arith.addf %16, %17 : vector<16x32xf32>
      %c0_16 = arith.constant 0 : index
      %c0_17 = arith.constant 0 : index
      %19 = vector.load %arg7[%c0_16, %c0_17] : memref<16x32xf32, #tpu.memory_space<vmem>>, vector<16x32xf32>
      tpu.vector_store %arg7[%c0_16, %c0_17], %18 {strides = array<i32>} : memref<16x32xf32, #tpu.memory_space<vmem>>, vector<16x32xf32>,
    } else {
    }
    return
  }
  func.func @transform_0(%arg0: i32, %arg1: i32, %arg2: i32) -> (i32, i32) {
    %c0_i32 = arith.constant 0 : i32
    return %arg0, %arg2 : i32, i32
  }
  func.func @transform_1(%arg0: i32, %arg1: i32, %arg2: i32) -> (i32, i32) {
    %c0_i32 = arith.constant 0 : i32
    return %arg2, %arg1 : i32, i32
  }
  func.func @transform_2(%arg0: i32, %arg1: i32, %arg2: i32) -> (i32, i32) {
    %c0_i32 = arith.constant 0 : i32
    %c0_i32_0 = arith.constant 0 : i32
    return %c0_i32, %arg1 : i32, i32
  }
  func.func @transform_3(%arg0: i32, %arg1: i32, %arg2: i32) -> (i32, i32) {
    %c0_i32 = arith.constant 0 : i32
    return %arg0, %arg1 : i32, i32
  }
  func.func @transform_4(%arg0: i32, %arg1: i32, %arg2: i32) -> (i32, i32) {
    %c0_i32 = arith.constant 0 : i32
    return %arg0, %arg1 : i32, i32
  }
}

module attributes {stable_mosaic.version = 11 : i64} {
  func.func @_ln_linear_kernel(%arg0: i32, %arg1: i32, %arg2: memref<16x32xf32, #tpu.memory_space<vmem>>, %arg3: memref<1x32xf32, #tpu.memory_space<vmem>>, %arg4: memref<1x32xf32, #tpu.memory_space<vmem>>, %arg5: memref<32x128xbf16, #tpu.memory_space<vmem>>, %arg6: memref<1x128xf32, #tpu.memory_space<vmem>>, %arg7: memref<16x128xf32, #tpu.memory_space<vmem>>) attributes {dimension_semantics = [#tpu.dimension_semantics<parallel>, #tpu.dimension_semantics<parallel>], iteration_bounds = array<i64: 1, 1>, scalar_prefetch = 0 : i64, scratch_operands = 0 : i64, tpu.core_type = #tpu.core_type<tc>, window_params = [{transform_indices = @transform_0, window_bounds = array<i64: 16, 32>}, {pipeline_mode = #tpu.pipeline_mode<synchronous>, transform_indices = @transform_1, window_bounds = array<i64: 1, 32>}, {pipeline_mode = #tpu.pipeline_mode<synchronous>, transform_indices = @transform_2, window_bounds = array<i64: 1, 32>}, {transform_indices = @transform_3, window_bounds = array<i64: 32, 128>}, {transform_indices = @transform_4, window_bounds = array<i64: 1, 128>}, {transform_indices = @transform_5, window_bounds = array<i64: 16, 128>}]} {
    %c0 = arith.constant 0 : index
    %c0_0 = arith.constant 0 : index
    %0 = vector.load %arg2[%c0, %c0_0] : memref<16x32xf32, #tpu.memory_space<vmem>>, vector<16x32xf32>
    %cst = arith.constant dense<0.000000e+00> : vector<16xf32>
    %1 = vector.multi_reduction <add>, %0, %cst [1] : vector<16x32xf32> to vector<16xf32>
    %2 = vector.shape_cast %1 : vector<16xf32> to vector<16x1xf32>
    %cst_1 = arith.constant 3.200000e+01 : f32
    %3 = vector.broadcast %cst_1 : f32 to vector<16x1xf32>
    %4 = arith.divf %2, %3 : vector<16x1xf32>
    %5 = vector.broadcast %4 : vector<16x1xf32> to vector<16x32xf32>
    %6 = arith.subf %0, %5 : vector<16x32xf32>
    %7 = arith.mulf %6, %6 : vector<16x32xf32>
    %cst_2 = arith.constant dense<0.000000e+00> : vector<16xf32>
    %8 = vector.multi_reduction <add>, %7, %cst_2 [1] : vector<16x32xf32> to vector<16xf32>
    %9 = vector.shape_cast %8 : vector<16xf32> to vector<16x1xf32>
    %cst_3 = arith.constant 3.200000e+01 : f32
    %10 = vector.broadcast %cst_3 : f32 to vector<16x1xf32>
    %11 = arith.divf %9, %10 : vector<16x1xf32>
    %12 = vector.broadcast %4 : vector<16x1xf32> to vector<16x32xf32>
    %13 = arith.subf %0, %12 : vector<16x32xf32>
    %cst_4 = arith.constant 9.99999974E-6 : f32
    %14 = vector.broadcast %cst_4 : f32 to vector<16x1xf32>
    %15 = arith.addf %11, %14 : vector<16x1xf32>
    %16 = math.rsqrt %15 : vector<16x1xf32>
    %17 = vector.broadcast %16 : vector<16x1xf32> to vector<16x32xf32>
    %18 = arith.mulf %13, %17 : vector<16x32xf32>
    %c0_5 = arith.constant 0 : index
    %c0_6 = arith.constant 0 : index
    %19 = vector.load %arg3[%c0_5, %c0_6] : memref<1x32xf32, #tpu.memory_space<vmem>>, vector<1x32xf32>
    %20 = vector.broadcast %19 : vector<1x32xf32> to vector<16x32xf32>
    %21 = arith.mulf %18, %20 : vector<16x32xf32>
    %c0_7 = arith.constant 0 : index
    %c0_8 = arith.constant 0 : index
    %22 = vector.load %arg4[%c0_7, %c0_8] : memref<1x32xf32, #tpu.memory_space<vmem>>, vector<1x32xf32>
    %23 = vector.broadcast %22 : vector<1x32xf32> to vector<16x32xf32>
    %24 = arith.addf %21, %23 : vector<16x32xf32>
    %25 = arith.truncf %24 : vector<16x32xf32> to vector<16x32xbf16>
    %c0_9 = arith.constant 0 : index
    %c0_10 = arith.constant 0 : index
    %26 = vector.load %arg5[%c0_9, %c0_10] : memref<32x128xbf16, #tpu.memory_space<vmem>>, vector<32x128xbf16>
    %cst_11 = arith.constant dense<0.000000e+00> : vector<16x128xf32>
    %27 = tpu.matmul %25, %26, %cst_11 {dimension_numbers = #tpu.dot_dimension_numbers<[1], [0], [0], [1], [0, 0, 1, 1], [], []>} : vector<16x32xbf16>, vector<32x128xbf16>, vector<16x128xf32> -> vector<16x128xf32>
    %c0_12 = arith.constant 0 : index
    %c0_13 = arith.constant 0 : index
    %28 = vector.load %arg6[%c0_12, %c0_13] : memref<1x128xf32, #tpu.memory_space<vmem>>, vector<1x128xf32>
    %29 = vector.broadcast %28 : vector<1x128xf32> to vector<16x128xf32>
    %30 = arith.addf %27, %29 : vector<16x128xf32>
    %cst_14 = arith.constant 5.000000e-01 : f32
    %31 = vector.broadcast %cst_14 : f32 to vector<16x128xf32>
    %32 = arith.mulf %31, %30 : vector<16x128xf32>
    %cst_15 = arith.constant 4.471500e-02 : f32
    %33 = vector.broadcast %cst_15 : f32 to vector<16x128xf32>
    %34 = arith.mulf %33, %30 : vector<16x128xf32>
    %35 = arith.mulf %34, %30 : vector<16x128xf32>
    %36 = arith.mulf %35, %30 : vector<16x128xf32>
    %37 = arith.addf %30, %36 : vector<16x128xf32>
    %cst_16 = arith.constant 0.797884583 : f32
    %38 = vector.broadcast %cst_16 : f32 to vector<16x128xf32>
    %39 = arith.mulf %38, %37 : vector<16x128xf32>
    %40 = math.tanh %39 : vector<16x128xf32>
    %cst_17 = arith.constant 1.000000e+00 : f32
    %41 = vector.broadcast %cst_17 : f32 to vector<16x128xf32>
    %42 = arith.addf %41, %40 : vector<16x128xf32>
    %43 = arith.mulf %32, %42 : vector<16x128xf32>
    %c0_18 = arith.constant 0 : index
    %c0_19 = arith.constant 0 : index
    %44 = vector.load %arg7[%c0_18, %c0_19] : memref<16x128xf32, #tpu.memory_space<vmem>>, vector<16x128xf32>
    tpu.vector_store %arg7[%c0_18, %c0_19], %43 {strides = array<i32>} : memref<16x128xf32, #tpu.memory_space<vmem>>, vector<16x128xf32>,
    return
  }
  func.func @transform_0(%arg0: i32, %arg1: i32) -> (i32, i32) {
    %c0_i32 = arith.constant 0 : i32
    %c0_i32_0 = arith.constant 0 : i32
    return %arg0, %c0_i32 : i32, i32
  }
  func.func @transform_1(%arg0: i32, %arg1: i32) -> (i32, i32) {
    %c0_i32 = arith.constant 0 : i32
    %c0_i32_0 = arith.constant 0 : i32
    %c0_i32_1 = arith.constant 0 : i32
    return %c0_i32, %c0_i32_0 : i32, i32
  }
  func.func @transform_2(%arg0: i32, %arg1: i32) -> (i32, i32) {
    %c0_i32 = arith.constant 0 : i32
    %c0_i32_0 = arith.constant 0 : i32
    %c0_i32_1 = arith.constant 0 : i32
    return %c0_i32, %c0_i32_0 : i32, i32
  }
  func.func @transform_3(%arg0: i32, %arg1: i32) -> (i32, i32) {
    %c0_i32 = arith.constant 0 : i32
    %c0_i32_0 = arith.constant 0 : i32
    return %c0_i32, %arg1 : i32, i32
  }
  func.func @transform_4(%arg0: i32, %arg1: i32) -> (i32, i32) {
    %c0_i32 = arith.constant 0 : i32
    %c0_i32_0 = arith.constant 0 : i32
    return %c0_i32, %arg1 : i32, i32
  }
  func.func @transform_5(%arg0: i32, %arg1: i32) -> (i32, i32) {
    %c0_i32 = arith.constant 0 : i32
    return %arg0, %arg1 : i32, i32
  }
}

module attributes {stable_mosaic.version = 11 : i64} {
  func.func @_linear_resid_kernel(%arg0: i32, %arg1: i32, %arg2: i32, %arg3: memref<16x128xf32, #tpu.memory_space<vmem>>, %arg4: memref<128x32xbf16, #tpu.memory_space<vmem>>, %arg5: memref<1x32xf32, #tpu.memory_space<vmem>>, %arg6: memref<16x32xf32, #tpu.memory_space<vmem>>, %arg7: memref<16x32xf32, #tpu.memory_space<vmem>>, %arg8: memref<16x32xf32, #tpu.memory_space<vmem>>) attributes {dimension_semantics = [#tpu.dimension_semantics<parallel>, #tpu.dimension_semantics<parallel>, #tpu.dimension_semantics<arbitrary>], iteration_bounds = array<i64: 1, 1, 1>, scalar_prefetch = 0 : i64, scratch_operands = 1 : i64, tpu.core_type = #tpu.core_type<tc>, window_params = [{transform_indices = @transform_0, window_bounds = array<i64: 16, 128>}, {transform_indices = @transform_1, window_bounds = array<i64: 128, 32>}, {transform_indices = @transform_2, window_bounds = array<i64: 1, 32>}, {transform_indices = @transform_3, window_bounds = array<i64: 16, 32>}, {transform_indices = @transform_4, window_bounds = array<i64: 16, 32>}]} {
    %c0_i32 = arith.constant 0 : i32
    %0 = arith.cmpi eq, %arg2, %c0_i32 : i32
    %1 = arith.extui %0 : i1 to i32
    %c0_i32_0 = arith.constant 0 : i32
    %2 = arith.cmpi ne, %1, %c0_i32_0 : i32
    scf.if %2 {
      %cst_10 = arith.constant 0.000000e+00 : f32
      %13 = vector.broadcast %cst_10 : f32 to vector<16x32xf32>
      %c0_11 = arith.constant 0 : index
      %c0_12 = arith.constant 0 : index
      %14 = vector.load %arg8[%c0_11, %c0_12] : memref<16x32xf32, #tpu.memory_space<vmem>>, vector<16x32xf32>
      tpu.vector_store %arg8[%c0_11, %c0_12], %13 {strides = array<i32>} : memref<16x32xf32, #tpu.memory_space<vmem>>, vector<16x32xf32>,
    } else {
    }
    %c0 = arith.constant 0 : index
    %c0_1 = arith.constant 0 : index
    %3 = vector.load %arg8[%c0, %c0_1] : memref<16x32xf32, #tpu.memory_space<vmem>>, vector<16x32xf32>
    %c0_2 = arith.constant 0 : index
    %c0_3 = arith.constant 0 : index
    %4 = vector.load %arg3[%c0_2, %c0_3] : memref<16x128xf32, #tpu.memory_space<vmem>>, vector<16x128xf32>
    %5 = arith.truncf %4 : vector<16x128xf32> to vector<16x128xbf16>
    %c0_4 = arith.constant 0 : index
    %c0_5 = arith.constant 0 : index
    %6 = vector.load %arg4[%c0_4, %c0_5] : memref<128x32xbf16, #tpu.memory_space<vmem>>, vector<128x32xbf16>
    %cst = arith.constant dense<0.000000e+00> : vector<16x32xf32>
    %7 = tpu.matmul %5, %6, %cst {dimension_numbers = #tpu.dot_dimension_numbers<[1], [0], [0], [1], [0, 0, 1, 1], [], []>} : vector<16x128xbf16>, vector<128x32xbf16>, vector<16x32xf32> -> vector<16x32xf32>
    %8 = arith.addf %3, %7 : vector<16x32xf32>
    %c0_6 = arith.constant 0 : index
    %c0_7 = arith.constant 0 : index
    %9 = vector.load %arg8[%c0_6, %c0_7] : memref<16x32xf32, #tpu.memory_space<vmem>>, vector<16x32xf32>
    tpu.vector_store %arg8[%c0_6, %c0_7], %8 {strides = array<i32>} : memref<16x32xf32, #tpu.memory_space<vmem>>, vector<16x32xf32>,
    %c0_i32_8 = arith.constant 0 : i32
    %10 = arith.cmpi eq, %arg2, %c0_i32_8 : i32
    %11 = arith.extui %10 : i1 to i32
    %c0_i32_9 = arith.constant 0 : i32
    %12 = arith.cmpi ne, %11, %c0_i32_9 : i32
    scf.if %12 {
      %c0_10 = arith.constant 0 : index
      %c0_11 = arith.constant 0 : index
      %13 = vector.load %arg8[%c0_10, %c0_11] : memref<16x32xf32, #tpu.memory_space<vmem>>, vector<16x32xf32>
      %c0_12 = arith.constant 0 : index
      %c0_13 = arith.constant 0 : index
      %14 = vector.load %arg5[%c0_12, %c0_13] : memref<1x32xf32, #tpu.memory_space<vmem>>, vector<1x32xf32>
      %15 = vector.broadcast %14 : vector<1x32xf32> to vector<16x32xf32>
      %16 = arith.addf %13, %15 : vector<16x32xf32>
      %c0_14 = arith.constant 0 : index
      %c0_15 = arith.constant 0 : index
      %17 = vector.load %arg6[%c0_14, %c0_15] : memref<16x32xf32, #tpu.memory_space<vmem>>, vector<16x32xf32>
      %18 = arith.addf %16, %17 : vector<16x32xf32>
      %c0_16 = arith.constant 0 : index
      %c0_17 = arith.constant 0 : index
      %19 = vector.load %arg7[%c0_16, %c0_17] : memref<16x32xf32, #tpu.memory_space<vmem>>, vector<16x32xf32>
      tpu.vector_store %arg7[%c0_16, %c0_17], %18 {strides = array<i32>} : memref<16x32xf32, #tpu.memory_space<vmem>>, vector<16x32xf32>,
    } else {
    }
    return
  }
  func.func @transform_0(%arg0: i32, %arg1: i32, %arg2: i32) -> (i32, i32) {
    %c0_i32 = arith.constant 0 : i32
    return %arg0, %arg2 : i32, i32
  }
  func.func @transform_1(%arg0: i32, %arg1: i32, %arg2: i32) -> (i32, i32) {
    %c0_i32 = arith.constant 0 : i32
    return %arg2, %arg1 : i32, i32
  }
  func.func @transform_2(%arg0: i32, %arg1: i32, %arg2: i32) -> (i32, i32) {
    %c0_i32 = arith.constant 0 : i32
    %c0_i32_0 = arith.constant 0 : i32
    return %c0_i32, %arg1 : i32, i32
  }
  func.func @transform_3(%arg0: i32, %arg1: i32, %arg2: i32) -> (i32, i32) {
    %c0_i32 = arith.constant 0 : i32
    return %arg0, %arg1 : i32, i32
  }
  func.func @transform_4(%arg0: i32, %arg1: i32, %arg2: i32) -> (i32, i32) {
    %c0_i32 = arith.constant 0 : i32
    return %arg0, %arg1 : i32, i32
  }
}

module attributes {stable_mosaic.version = 11 : i64} {
  func.func @_lnf_lmhead_kernel(%arg0: i32, %arg1: i32, %arg2: memref<16x32xf32, #tpu.memory_space<vmem>>, %arg3: memref<1x32xf32, #tpu.memory_space<vmem>>, %arg4: memref<1x32xf32, #tpu.memory_space<vmem>>, %arg5: memref<128x32xf32, #tpu.memory_space<vmem>>, %arg6: memref<16x128xf32, #tpu.memory_space<vmem>>) attributes {dimension_semantics = [#tpu.dimension_semantics<parallel>, #tpu.dimension_semantics<parallel>], iteration_bounds = array<i64: 1, 1>, scalar_prefetch = 0 : i64, scratch_operands = 0 : i64, tpu.core_type = #tpu.core_type<tc>, window_params = [{transform_indices = @transform_0, window_bounds = array<i64: 16, 32>}, {pipeline_mode = #tpu.pipeline_mode<synchronous>, transform_indices = @transform_1, window_bounds = array<i64: 1, 32>}, {pipeline_mode = #tpu.pipeline_mode<synchronous>, transform_indices = @transform_2, window_bounds = array<i64: 1, 32>}, {transform_indices = @transform_3, window_bounds = array<i64: 128, 32>}, {transform_indices = @transform_4, window_bounds = array<i64: 16, 128>}]} {
    %c0 = arith.constant 0 : index
    %c0_0 = arith.constant 0 : index
    %0 = vector.load %arg2[%c0, %c0_0] : memref<16x32xf32, #tpu.memory_space<vmem>>, vector<16x32xf32>
    %cst = arith.constant dense<0.000000e+00> : vector<16xf32>
    %1 = vector.multi_reduction <add>, %0, %cst [1] : vector<16x32xf32> to vector<16xf32>
    %2 = vector.shape_cast %1 : vector<16xf32> to vector<16x1xf32>
    %cst_1 = arith.constant 3.200000e+01 : f32
    %3 = vector.broadcast %cst_1 : f32 to vector<16x1xf32>
    %4 = arith.divf %2, %3 : vector<16x1xf32>
    %5 = vector.broadcast %4 : vector<16x1xf32> to vector<16x32xf32>
    %6 = arith.subf %0, %5 : vector<16x32xf32>
    %7 = arith.mulf %6, %6 : vector<16x32xf32>
    %cst_2 = arith.constant dense<0.000000e+00> : vector<16xf32>
    %8 = vector.multi_reduction <add>, %7, %cst_2 [1] : vector<16x32xf32> to vector<16xf32>
    %9 = vector.shape_cast %8 : vector<16xf32> to vector<16x1xf32>
    %cst_3 = arith.constant 3.200000e+01 : f32
    %10 = vector.broadcast %cst_3 : f32 to vector<16x1xf32>
    %11 = arith.divf %9, %10 : vector<16x1xf32>
    %12 = vector.broadcast %4 : vector<16x1xf32> to vector<16x32xf32>
    %13 = arith.subf %0, %12 : vector<16x32xf32>
    %cst_4 = arith.constant 9.99999974E-6 : f32
    %14 = vector.broadcast %cst_4 : f32 to vector<16x1xf32>
    %15 = arith.addf %11, %14 : vector<16x1xf32>
    %16 = math.rsqrt %15 : vector<16x1xf32>
    %17 = vector.broadcast %16 : vector<16x1xf32> to vector<16x32xf32>
    %18 = arith.mulf %13, %17 : vector<16x32xf32>
    %c0_5 = arith.constant 0 : index
    %c0_6 = arith.constant 0 : index
    %19 = vector.load %arg3[%c0_5, %c0_6] : memref<1x32xf32, #tpu.memory_space<vmem>>, vector<1x32xf32>
    %20 = vector.broadcast %19 : vector<1x32xf32> to vector<16x32xf32>
    %21 = arith.mulf %18, %20 : vector<16x32xf32>
    %c0_7 = arith.constant 0 : index
    %c0_8 = arith.constant 0 : index
    %22 = vector.load %arg4[%c0_7, %c0_8] : memref<1x32xf32, #tpu.memory_space<vmem>>, vector<1x32xf32>
    %23 = vector.broadcast %22 : vector<1x32xf32> to vector<16x32xf32>
    %24 = arith.addf %21, %23 : vector<16x32xf32>
    %25 = arith.truncf %24 : vector<16x32xf32> to vector<16x32xbf16>
    %c0_9 = arith.constant 0 : index
    %c0_10 = arith.constant 0 : index
    %26 = vector.load %arg5[%c0_9, %c0_10] : memref<128x32xf32, #tpu.memory_space<vmem>>, vector<128x32xf32>
    %27 = arith.truncf %26 : vector<128x32xf32> to vector<128x32xbf16>
    %cst_11 = arith.constant dense<0.000000e+00> : vector<16x128xf32>
    %28 = tpu.matmul %25, %27, %cst_11 {dimension_numbers = #tpu.dot_dimension_numbers<[1], [1], [0], [0], [0, 0, 1, 0], [], []>} : vector<16x32xbf16>, vector<128x32xbf16>, vector<16x128xf32> -> vector<16x128xf32>
    %c0_12 = arith.constant 0 : index
    %c0_13 = arith.constant 0 : index
    %29 = vector.load %arg6[%c0_12, %c0_13] : memref<16x128xf32, #tpu.memory_space<vmem>>, vector<16x128xf32>
    tpu.vector_store %arg6[%c0_12, %c0_13], %28 {strides = array<i32>} : memref<16x128xf32, #tpu.memory_space<vmem>>, vector<16x128xf32>,
    return
  }
  func.func @transform_0(%arg0: i32, %arg1: i32) -> (i32, i32) {
    %c0_i32 = arith.constant 0 : i32
    %c0_i32_0 = arith.constant 0 : i32
    return %arg0, %c0_i32 : i32, i32
  }
  func.func @transform_1(%arg0: i32, %arg1: i32) -> (i32, i32) {
    %c0_i32 = arith.constant 0 : i32
    %c0_i32_0 = arith.constant 0 : i32
    %c0_i32_1 = arith.constant 0 : i32
    return %c0_i32, %c0_i32_0 : i32, i32
  }
  func.func @transform_2(%arg0: i32, %arg1: i32) -> (i32, i32) {
    %c0_i32 = arith.constant 0 : i32
    %c0_i32_0 = arith.constant 0 : i32
    %c0_i32_1 = arith.constant 0 : i32
    return %c0_i32, %c0_i32_0 : i32, i32
  }
  func.func @transform_3(%arg0: i32, %arg1: i32) -> (i32, i32) {
    %c0_i32 = arith.constant 0 : i32
    %c0_i32_0 = arith.constant 0 : i32
    return %arg1, %c0_i32 : i32, i32
  }
  func.func @transform_4(%arg0: i32, %arg1: i32) -> (i32, i32) {
    %c0_i32 = arith.constant 0 : i32
    return %arg0, %arg1 : i32, i32
  }
}

</mosaic_0001>

<llo_original>
// kernel: gpt2_forward.11
$region0: #{gpt2_forward.11}
  #allocation0 [shape = 'u32[]', space=smem, size = 0x4, offset = 0x4, fixed_abs, tag = 'smem constant byte address 0x4 - core index']
  #allocation1 [shape = 'u32[144,128]{1,0:T(1,128)}', space=vmem, size = 0x12000, scoped, tag = 'internal scratch']
  %s0 = inlined_call_operand.vmem [shape: f32[16,32], index: 0, kind: input, shape index: {}]
  %s1 = inlined_call_operand.vmem [shape: f32[1,32], index: 1, kind: input, shape index: {}]
  %s2 = inlined_call_operand.vmem [shape: f32[1,32], index: 2, kind: input, shape index: {}]
  %s3 = inlined_call_operand.vmem [shape: bf16[32,96], index: 3, kind: input, shape index: {}]
  %s4 = inlined_call_operand.vmem [shape: f32[1,96], index: 4, kind: input, shape index: {}]
  %s5 = inlined_call_operand.vmem [shape: f32[16,96], index: 5, kind: output, shape index: {}]
  %s6 = sld [smem:[#allocation0]]
  $region30: #{gpt2_forward.11} parent=0
    _
  %s8 = ssub.s32 1, %s6
  %s9 = scalar_select 0, %s8, %s6
  // Predicated region
  $region2: #{gpt2_forward.11} parent=0 // pred_check
    _
  $region3: #{gpt2_forward.11} parent=0 // pred_check_branch
    %11 = sbr.rel (0) target = $region5
  $region4: #{gpt2_forward.11} parent=0 // pred_region
    _
  $region5: #{gpt2_forward.11} parent=0 // pred_fallthru
    _
  // Predicated region
  $region6: #{gpt2_forward.11} parent=0 // pred_check
    _
  $region7: #{gpt2_forward.11} parent=0 // pred_check_branch
    %13 = sbr.rel (0) target = $region9
  $region8: #{gpt2_forward.11} parent=0 // pred_region
    _
  $region9: #{gpt2_forward.11} parent=0 // pred_fallthru
    _
  // Predicated region
  $region10: #{gpt2_forward.11} parent=0 // pred_check
    _
  $region11: #{gpt2_forward.11} parent=0 // pred_check_branch
    %15 = sbr.rel (0) target = $region13
  $region12: #{gpt2_forward.11} parent=0 // pred_region
    _
  $region13: #{gpt2_forward.11} parent=0 // pred_fallthru
    _
  // Predicated region
  $region14: #{gpt2_forward.11} parent=0 // pred_check
    _
  $region15: #{gpt2_forward.11} parent=0 // pred_check_branch
    %17 = sbr.rel (0) target = $region17
  $region16: #{gpt2_forward.11} parent=0 // pred_region
    _
  $region17: #{gpt2_forward.11} parent=0 // pred_fallthru
    _
  // Predicated region
  $region18: #{gpt2_forward.11} parent=0 // pred_check
    _
  $region19: #{gpt2_forward.11} parent=0 // pred_check_branch
    %19 = sbr.rel (0) target = $region21
  $region20: #{gpt2_forward.11} parent=0 // pred_region
    _
  $region21: #{gpt2_forward.11} parent=0 // pred_fallthru
    _
  %v21 = vld [vmem:[%s0] sm:$0xff]
  %v22 = vld [vmem:[%s0 + $0x8] sm:$0xff]
  %vm23 = vcmask 261120
  %v24 = vsel %vm23, %v21, 0.0
  %25 = vadd.xlane.f32.xlu0 %v24
  %v26 = vpop.xlane.xlu0 %25
  %v27 = vsel %vm23, %v22, 0.0
  %28 = vadd.xlane.f32.xlu0 %v27
  %v29 = vpop.xlane.xlu0 %28
  %v30 = vrcp.pop 32.0
  %v31 = vmul.f32 %v26, %v30
  %v32 = vmul.f32 %v29, %v30
  %v33 = vsub.f32 %v21, %v31
  %v34 = vsub.f32 %v22, %v32
  %v35 = vmul.f32 %v33, %v33
  %v36 = vmul.f32 %v34, %v34
  %v37 = vsel %vm23, %v35, 0.0
  %38 = vadd.xlane.f32.xlu0 %v37
  %v39 = vpop.xlane.xlu0 %38
  %v40 = vsel %vm23, %v36, 0.0
  %41 = vadd.xlane.f32.xlu0 %v40
  %v42 = vpop.xlane.xlu0 %41
  %v43 = vmul.f32 %v39, %v30
  %v44 = vmul.f32 %v42, %v30
  %v45 = vadd.f32 %v43, 1e-05
  %v46 = vadd.f32 %v44, 1e-05
  %v47 = vrsqrt.pop %v45
  %v48 = vrsqrt.pop %v46
  %v49 = vmul.f32 %v33, %v47
  %v50 = vmul.f32 %v34, %v48
  %v51 = vld [vmem:[%s1] sm:$0x1]
  %v53 = vlaneseq
  %v54 = vshrl.u32 %v53, 7
  %v55 = vsub.s32 0, %v54
  %v56 = vrot.slane %v51, %v55
  %v58 = vmul.f32 %v49, %v56
  %v59 = vmul.f32 %v50, %v56
  %v60 = vld [vmem:[%s2] sm:$0x1]
  %v62 = vlaneseq
  %v63 = vshrl.u32 %v62, 7
  %v64 = vsub.s32 0, %v63
  %v65 = vrot.slane %v60, %v64
  %v67 = vadd.f32 %v58, %v65
  %v68 = vadd.f32 %v59, %v65
  %v69 = vpack.c.bf16 %v68, %v67
  %v70 = vld [vmem:[%s3] sm:$0xf]
  %v71 = vld [vmem:[%s3 + $0x4] sm:$0xf]
  %v72 = vld [vmem:[%s3 + $0x8] sm:$0xf]
  %v73 = vld [vmem:[%s3 + $0xc] sm:$0xf]
  %v74 = vld [vmem:[%s4] sm:$0x1]
  %v76 = vlaneseq
  %v77 = vshrl.u32 %v76, 7
  %v78 = vsub.s32 0, %v77
  %v79 = vrot.slane %v74, %v78
  %v85 = vunpack.c.l.b16 %v70
  %v86 = vunpack.c.l.b16 %v71
  %v87 = vunpack.c.l.b16 %v72
  %v88 = vunpack.c.l.b16 %v73
  %v89 = vpack.c.b16 %v86, %v85
  %v90 = vpack.c.b16 %v88, %v87
  %v94 = vsel %vm23, %v69, 0
  %96 = vmatprep.subr.bf16.mxu0 0
  %97 = vmatpush1.bf16.msra.mxu0 %v89
  %98 = vmatprep.subr.bf16.mxu0 0
  %99 = vmatpush1.bf16.msra.mxu0 %v90
  %100 = vmatprep.subr.bf16.mxu0 0
  %101 = vmatpush1.bf16.msra.mxu0 0
  %102 = vmatprep.subr.bf16.mxu0 0
  %103 = vmatpush1.bf16.msra.mxu0 0
  %104 = vmatprep.subr.bf16.mxu0 0
  %105 = vmatpush1.bf16.msra.mxu0 0
  %106 = vmatprep.subr.bf16.mxu0 0
  %107 = vmatpush1.bf16.msra.mxu0 0
  %108 = vmatprep.subr.bf16.mxu0 0
  %109 = vmatpush1.bf16.msra.mxu0 0
  %110 = vmatprep.subr.bf16.mxu0 0
  %111 = vmatpush1.bf16.msra.mxu0 0
  %112 = vmatprep.subr.bf16.mxu0 0
  %113 = vmatpush1.bf16.msra.mxu0 0
  %114 = vmatprep.subr.bf16.mxu0 0
  %115 = vmatpush1.bf16.msra.mxu0 0
  %116 = vmatprep.subr.bf16.mxu0 0
  %117 = vmatpush1.bf16.msra.mxu0 0
  %118 = vmatprep.subr.bf16.mxu0 0
  %119 = vmatpush1.bf16.msra.mxu0 0
  %120 = vmatprep.subr.bf16.mxu0 0
  %121 = vmatpush1.bf16.msra.mxu0 0
  %122 = vmatprep.subr.bf16.mxu0 0
  %123 = vmatpush1.bf16.msra.mxu0 0
  %124 = vmatprep.subr.bf16.mxu0 0
  %125 = vmatpush1.bf16.msra.mxu0 0
  %126 = vmatprep.subr.bf16.mxu0 0
  %127 = vmatpush1.bf16.msra.mxu0 0
  %128 = vmatprep.mubr.bf16.mxu0 0
  %129 = vmatmul.mubr.bf16.gmra.mrb[0].mxu0 %v94
  %v130 = vpop.f32.mrb[0].mxu0
  %v131 = vadd.f32 %v79, %v130
  %v132 = vpop.f32.mrb[0].mxu0
  %v133 = vpop.f32.mrb[0].mxu0
  %v134 = vadd.f32 %v79, %v133
  %v135 = vpop.f32.mrb[0].mxu0
  %136 = vdwg.mxu0
  %vm137 = vcmask 785408
  %138 = vst.msk [vmem:[%s5] sm:$0xff] %vm137, %v131
  %139 = vst.msk [vmem:[%s5 + $0x8] sm:$0xff] %vm137, %v134
  // Predicated region
  $region22: #{gpt2_forward.11} parent=0 // pred_check
    _
  $region23: #{gpt2_forward.11} parent=0 // pred_check_branch
    %141 = sbr.rel (0) target = $region25
  $region24: #{gpt2_forward.11} parent=0 // pred_region
    _
  $region25: #{gpt2_forward.11} parent=0 // pred_fallthru
    _
  // Predicated region
  $region26: #{gpt2_forward.11} parent=0 // pred_check
    _
  $region27: #{gpt2_forward.11} parent=0 // pred_check_branch
    %143 = sbr.rel (0) target = $region29
  $region28: #{gpt2_forward.11} parent=0 // pred_region
    _
  $region29: #{gpt2_forward.11} parent=0 // pred_fallthru
    _

// kernel: gpt2_forward.14
$region0: #{gpt2_forward.14}
  #allocation0 [shape = 'u32[]', space=smem, size = 0x4, offset = 0x4, fixed_abs, tag = 'smem constant byte address 0x4 - core index']
  #allocation1 [shape = 'u32[144,128]{1,0:T(1,128)}', space=vmem, size = 0x12000, scoped, tag = 'internal scratch']
  %s0 = inlined_call_operand.vmem [shape: f32[16,32], index: 0, kind: input, shape index: {}]
  %s1 = inlined_call_operand.vmem [shape: f32[1,32], index: 1, kind: input, shape index: {}]
  %s2 = inlined_call_operand.vmem [shape: f32[1,32], index: 2, kind: input, shape index: {}]
  %s3 = inlined_call_operand.vmem [shape: bf16[32,128], index: 3, kind: input, shape index: {}]
  %s4 = inlined_call_operand.vmem [shape: f32[1,128], index: 4, kind: input, shape index: {}]
  %s5 = inlined_call_operand.vmem [shape: f32[16,128], index: 5, kind: output, shape index: {}]
  %s6 = sld [smem:[#allocation0]]
  $region30: #{gpt2_forward.14} parent=0
    _
  %s8 = ssub.s32 1, %s6
  %s9 = scalar_select 0, %s8, %s6
  // Predicated region
  $region2: #{gpt2_forward.14} parent=0 // pred_check
    _
  $region3: #{gpt2_forward.14} parent=0 // pred_check_branch
    %11 = sbr.rel (0) target = $region5
  $region4: #{gpt2_forward.14} parent=0 // pred_region
    _
  $region5: #{gpt2_forward.14} parent=0 // pred_fallthru
    _
  // Predicated region
  $region6: #{gpt2_forward.14} parent=0 // pred_check
    _
  $region7: #{gpt2_forward.14} parent=0 // pred_check_branch
    %13 = sbr.rel (0) target = $region9
  $region8: #{gpt2_forward.14} parent=0 // pred_region
    _
  $region9: #{gpt2_forward.14} parent=0 // pred_fallthru
    _
  // Predicated region
  $region10: #{gpt2_forward.14} parent=0 // pred_check
    _
  $region11: #{gpt2_forward.14} parent=0 // pred_check_branch
    %15 = sbr.rel (0) target = $region13
  $region12: #{gpt2_forward.14} parent=0 // pred_region
    _
  $region13: #{gpt2_forward.14} parent=0 // pred_fallthru
    _
  // Predicated region
  $region14: #{gpt2_forward.14} parent=0 // pred_check
    _
  $region15: #{gpt2_forward.14} parent=0 // pred_check_branch
    %17 = sbr.rel (0) target = $region17
  $region16: #{gpt2_forward.14} parent=0 // pred_region
    _
  $region17: #{gpt2_forward.14} parent=0 // pred_fallthru
    _
  // Predicated region
  $region18: #{gpt2_forward.14} parent=0 // pred_check
    _
  $region19: #{gpt2_forward.14} parent=0 // pred_check_branch
    %19 = sbr.rel (0) target = $region21
  $region20: #{gpt2_forward.14} parent=0 // pred_region
    _
  $region21: #{gpt2_forward.14} parent=0 // pred_fallthru
    _
  %v21 = vld [vmem:[%s0] sm:$0xff]
  %v22 = vld [vmem:[%s0 + $0x8] sm:$0xff]
  %vm23 = vcmask 261120
  %v24 = vsel %vm23, %v21, 0.0
  %25 = vadd.xlane.f32.xlu0 %v24
  %v26 = vpop.xlane.xlu0 %25
  %v27 = vsel %vm23, %v22, 0.0
  %28 = vadd.xlane.f32.xlu0 %v27
  %v29 = vpop.xlane.xlu0 %28
  %v30 = vrcp.pop 32.0
  %v31 = vmul.f32 %v26, %v30
  %v32 = vmul.f32 %v29, %v30
  %v33 = vsub.f32 %v21, %v31
  %v34 = vsub.f32 %v22, %v32
  %v35 = vmul.f32 %v33, %v33
  %v36 = vmul.f32 %v34, %v34
  %v37 = vsel %vm23, %v35, 0.0
  %38 = vadd.xlane.f32.xlu0 %v37
  %v39 = vpop.xlane.xlu0 %38
  %v40 = vsel %vm23, %v36, 0.0
  %41 = vadd.xlane.f32.xlu0 %v40
  %v42 = vpop.xlane.xlu0 %41
  %v43 = vmul.f32 %v39, %v30
  %v44 = vmul.f32 %v42, %v30
  %v45 = vadd.f32 %v43, 1e-05
  %v46 = vadd.f32 %v44, 1e-05
  %v47 = vrsqrt.pop %v45
  %v48 = vrsqrt.pop %v46
  %v49 = vmul.f32 %v33, %v47
  %v50 = vmul.f32 %v34, %v48
  %v51 = vld [vmem:[%s1] sm:$0x1]
  %v53 = vlaneseq
  %v54 = vshrl.u32 %v53, 7
  %v55 = vsub.s32 0, %v54
  %v56 = vrot.slane %v51, %v55
  %v58 = vmul.f32 %v49, %v56
  %v59 = vmul.f32 %v50, %v56
  %v60 = vld [vmem:[%s2] sm:$0x1]
  %v62 = vlaneseq
  %v63 = vshrl.u32 %v62, 7
  %v64 = vsub.s32 0, %v63
  %v65 = vrot.slane %v60, %v64
  %v67 = vadd.f32 %v58, %v65
  %v68 = vadd.f32 %v59, %v65
  %v69 = vpack.c.bf16 %v68, %v67
  %v70 = vld [vmem:[%s3] sm:$0xf]
  %v71 = vld [vmem:[%s3 + $0x4] sm:$0xf]
  %v72 = vld [vmem:[%s3 + $0x8] sm:$0xf]
  %v73 = vld [vmem:[%s3 + $0xc] sm:$0xf]
  %v74 = vld [vmem:[%s4] sm:$0x1]
  %v76 = vlaneseq
  %v77 = vshrl.u32 %v76, 7
  %v78 = vsub.s32 0, %v77
  %v79 = vrot.slane %v74, %v78
  %v85 = vunpack.c.l.b16 %v70
  %v86 = vunpack.c.l.b16 %v71
  %v87 = vunpack.c.l.b16 %v72
  %v88 = vunpack.c.l.b16 %v73
  %v89 = vpack.c.b16 %v86, %v85
  %v90 = vpack.c.b16 %v88, %v87
  %v94 = vsel %vm23, %v69, 0
  %96 = vmatprep.subr.bf16.mxu0 0
  %97 = vmatpush1.bf16.msra.mxu0 %v89
  %98 = vmatprep.subr.bf16.mxu0 0
  %99 = vmatpush1.bf16.msra.mxu0 %v90
  %100 = vmatprep.subr.bf16.mxu0 0
  %101 = vmatpush1.bf16.msra.mxu0 0
  %102 = vmatprep.subr.bf16.mxu0 0
  %103 = vmatpush1.bf16.msra.mxu0 0
  %104 = vmatprep.subr.bf16.mxu0 0
  %105 = vmatpush1.bf16.msra.mxu0 0
  %106 = vmatprep.subr.bf16.mxu0 0
  %107 = vmatpush1.bf16.msra.mxu0 0
  %108 = vmatprep.subr.bf16.mxu0 0
  %109 = vmatpush1.bf16.msra.mxu0 0
  %110 = vmatprep.subr.bf16.mxu0 0
  %111 = vmatpush1.bf16.msra.mxu0 0
  %112 = vmatprep.subr.bf16.mxu0 0
  %113 = vmatpush1.bf16.msra.mxu0 0
  %114 = vmatprep.subr.bf16.mxu0 0
  %115 = vmatpush1.bf16.msra.mxu0 0
  %116 = vmatprep.subr.bf16.mxu0 0
  %117 = vmatpush1.bf16.msra.mxu0 0
  %118 = vmatprep.subr.bf16.mxu0 0
  %119 = vmatpush1.bf16.msra.mxu0 0
  %120 = vmatprep.subr.bf16.mxu0 0
  %121 = vmatpush1.bf16.msra.mxu0 0
  %122 = vmatprep.subr.bf16.mxu0 0
  %123 = vmatpush1.bf16.msra.mxu0 0
  %124 = vmatprep.subr.bf16.mxu0 0
  %125 = vmatpush1.bf16.msra.mxu0 0
  %126 = vmatprep.subr.bf16.mxu0 0
  %127 = vmatpush1.bf16.msra.mxu0 0
  %128 = vmatprep.mubr.bf16.mxu0 0
  %129 = vmatmul.mubr.bf16.gmra.mrb[0].mxu0 %v94
  %v130 = vpop.f32.mrb[0].mxu0
  %v131 = vadd.f32 %v79, %v130
  %v132 = vpop.f32.mrb[0].mxu0
  %v133 = vpop.f32.mrb[0].mxu0
  %v134 = vadd.f32 %v79, %v133
  %v135 = vpop.f32.mrb[0].mxu0
  %136 = vdwg.mxu0
  %v137 = vmul.f32 %v131, 0.5
  %v138 = vmul.f32 %v134, 0.5
  %v139 = vmul.f32 %v131, 0.044715
  %v140 = vmul.f32 %v134, 0.044715
  %v141 = vmul.f32 %v139, %v131
  %v142 = vmul.f32 %v140, %v134
  %v143 = vmul.f32 %v141, %v131
  %v144 = vmul.f32 %v142, %v134
  %v145 = vadd.f32 %v131, %v143
  %v146 = vadd.f32 %v134, %v144
  %v147 = vmul.f32 %v145, 0.7978846
  %v148 = vmul.f32 %v146, 0.7978846
  %v149 = vtanh.pop %v147
  %v150 = vtanh.pop %v148
  %v151 = vadd.f32 %v149, 1.0
  %v152 = vadd.f32 %v150, 1.0
  %v153 = vmul.f32 %v137, %v151
  %v154 = vmul.f32 %v138, %v152
  %155 = vst [vmem:[%s5] sm:$0xff] %v153
  %156 = vst [vmem:[%s5 + $0x8] sm:$0xff] %v154
  // Predicated region
  $region22: #{gpt2_forward.14} parent=0 // pred_check
    _
  $region23: #{gpt2_forward.14} parent=0 // pred_check_branch
    %158 = sbr.rel (0) target = $region25
  $region24: #{gpt2_forward.14} parent=0 // pred_region
    _
  $region25: #{gpt2_forward.14} parent=0 // pred_fallthru
    _
  // Predicated region
  $region26: #{gpt2_forward.14} parent=0 // pred_check
    _
  $region27: #{gpt2_forward.14} parent=0 // pred_check_branch
    %160 = sbr.rel (0) target = $region29
  $region28: #{gpt2_forward.14} parent=0 // pred_region
    _
  $region29: #{gpt2_forward.14} parent=0 // pred_fallthru
    _

// kernel: gpt2_forward.13
$region0: #{gpt2_forward.13}
  #allocation0 [shape = 'u32[]', space=smem, size = 0x4, offset = 0x4, fixed_abs, tag = 'smem constant byte address 0x4 - core index']
  #allocation1 [shape = 'u32[144,128]{1,0:T(1,128)}', space=vmem, size = 0x12000, scoped, tag = 'internal scratch']
  #allocation2 [shape = 'f32[16,32]{1,0:T(8,128)}', space=vmem, size = 0x2000, scoped, tag = 'scratch operand']
  %s0 = inlined_call_operand.vmem [shape: f32[16,32], index: 0, kind: input, shape index: {}]
  %s1 = inlined_call_operand.vmem [shape: bf16[32,32], index: 1, kind: input, shape index: {}]
  %s2 = inlined_call_operand.vmem [shape: f32[1,32], index: 2, kind: input, shape index: {}]
  %s3 = inlined_call_operand.vmem [shape: f32[16,32], index: 3, kind: input, shape index: {}]
  %s4 = inlined_call_operand.vmem [shape: f32[16,32], index: 4, kind: output, shape index: {}]
  %s5 = sld [smem:[#allocation0]]
  $region34: #{gpt2_forward.13} parent=0
    _
  %s7 = ssub.s32 1, %s5
  %s8 = scalar_select 0, %s7, %s5
  // Predicated region
  $region2: #{gpt2_forward.13} parent=0 // pred_check
    _
  $region3: #{gpt2_forward.13} parent=0 // pred_check_branch
    %10 = sbr.rel (0) target = $region5
  $region4: #{gpt2_forward.13} parent=0 // pred_region
    _
  $region5: #{gpt2_forward.13} parent=0 // pred_fallthru
    _
  // Predicated region
  $region6: #{gpt2_forward.13} parent=0 // pred_check
    _
  $region7: #{gpt2_forward.13} parent=0 // pred_check_branch
    %12 = sbr.rel (0) target = $region9
  $region8: #{gpt2_forward.13} parent=0 // pred_region
    _
  $region9: #{gpt2_forward.13} parent=0 // pred_fallthru
    _
  // Predicated region
  $region10: #{gpt2_forward.13} parent=0 // pred_check
    _
  $region11: #{gpt2_forward.13} parent=0 // pred_check_branch
    %14 = sbr.rel (0) target = $region13
  $region12: #{gpt2_forward.13} parent=0 // pred_region
    _
  $region13: #{gpt2_forward.13} parent=0 // pred_fallthru
    _
  // Predicated region
  $region14: #{gpt2_forward.13} parent=0 // pred_check
    _
  $region15: #{gpt2_forward.13} parent=0 // pred_check_branch
    %16 = sbr.rel (0) target = $region17
  $region16: #{gpt2_forward.13} parent=0 // pred_region
    _
  $region17: #{gpt2_forward.13} parent=0 // pred_fallthru
    _
  %p18 = scmp.eq.s32.totalorder 0, 0
  // Predicated region
  $region18: #{gpt2_forward.13} parent=0 // pred_check
    %p19 = pneg %p18
  $region19: #{gpt2_forward.13} parent=0 // pred_check_branch
    %21 = sbr.rel (%p19) target = $region21
  $region20: #{gpt2_forward.13} parent=0 // pred_region
    %vm22 = vcmask 261120
    %23 = vst.msk [vmem:[#allocation2] sm:$0xff] %vm22, 0.0
    %24 = vst.msk [vmem:[#allocation2 + $0x8] sm:$0xff] %vm22, 0.0
  $region21: #{gpt2_forward.13} parent=0 // pred_fallthru
    _
  %v25 = vld [vmem:[#allocation2] sm:$0xff]
  %v26 = vld [vmem:[#allocation2 + $0x8] sm:$0xff]
  %v27 = vld [vmem:[%s0] sm:$0xff]
  %v28 = vld [vmem:[%s0 + $0x8] sm:$0xff]
  %v29 = vpack.c.bf16 %v28, %v27
  %v30 = vld [vmem:[%s1] sm:$0xf]
  %v31 = vld [vmem:[%s1 + $0x4] sm:$0xf]
  %v32 = vld [vmem:[%s1 + $0x8] sm:$0xf]
  %v33 = vld [vmem:[%s1 + $0xc] sm:$0xf]
  %v38 = vunpack.c.l.b16 %v30
  %v39 = vunpack.c.l.b16 %v31
  %v40 = vunpack.c.l.b16 %v32
  %v41 = vunpack.c.l.b16 %v33
  %v42 = vpack.c.b16 %v39, %v38
  %v43 = vpack.c.b16 %v41, %v40
  %vm46 = vcmask 261120
  %v48 = vsel %vm46, %v29, 0
  %50 = vmatprep.subr.bf16.mxu0 0
  %51 = vmatpush1.bf16.msra.mxu0 %v42
  %52 = vmatprep.subr.bf16.mxu0 0
  %53 = vmatpush1.bf16.msra.mxu0 %v43
  %54 = vmatprep.subr.bf16.mxu0 0
  %55 = vmatpush1.bf16.msra.mxu0 0
  %56 = vmatprep.subr.bf16.mxu0 0
  %57 = vmatpush1.bf16.msra.mxu0 0
  %58 = vmatprep.subr.bf16.mxu0 0
  %59 = vmatpush1.bf16.msra.mxu0 0
  %60 = vmatprep.subr.bf16.mxu0 0
  %61 = vmatpush1.bf16.msra.mxu0 0
  %62 = vmatprep.subr.bf16.mxu0 0
  %63 = vmatpush1.bf16.msra.mxu0 0
  %64 = vmatprep.subr.bf16.mxu0 0
  %65 = vmatpush1.bf16.msra.mxu0 0
  %66 = vmatprep.subr.bf16.mxu0 0
  %67 = vmatpush1.bf16.msra.mxu0 0
  %68 = vmatprep.subr.bf16.mxu0 0
  %69 = vmatpush1.bf16.msra.mxu0 0
  %70 = vmatprep.subr.bf16.mxu0 0
  %71 = vmatpush1.bf16.msra.mxu0 0
  %72 = vmatprep.subr.bf16.mxu0 0
  %73 = vmatpush1.bf16.msra.mxu0 0
  %74 = vmatprep.subr.bf16.mxu0 0
  %75 = vmatpush1.bf16.msra.mxu0 0
  %76 = vmatprep.subr.bf16.mxu0 0
  %77 = vmatpush1.bf16.msra.mxu0 0
  %78 = vmatprep.subr.bf16.mxu0 0
  %79 = vmatpush1.bf16.msra.mxu0 0
  %80 = vmatprep.subr.bf16.mxu0 0
  %81 = vmatpush1.bf16.msra.mxu0 0
  %82 = vmatprep.mubr.bf16.mxu0 0
  %83 = vmatmul.mubr.bf16.gmra.mrb[0].mxu0 %v48
  %v84 = vpop.f32.mrb[0].mxu0
  %v85 = vadd.f32 0.0, %v84
  %v86 = vpop.f32.mrb[0].mxu0
  %v87 = vpop.f32.mrb[0].mxu0
  %v88 = vadd.f32 0.0, %v87
  %v89 = vpop.f32.mrb[0].mxu0
  %90 = vdwg.mxu0
  %v91 = vadd.f32 %v25, %v85
  %v92 = vadd.f32 %v26, %v88
  %93 = vst.msk [vmem:[#allocation2] sm:$0xff] %vm46, %v91
  %94 = vst.msk [vmem:[#allocation2 + $0x8] sm:$0xff] %vm46, %v92
  // Predicated region
  $region22: #{gpt2_forward.13} parent=0 // pred_check
    %p95 = pneg %p18
  $region23: #{gpt2_forward.13} parent=0 // pred_check_branch
    %97 = sbr.rel (%p95) target = $region25
  $region24: #{gpt2_forward.13} parent=0 // pred_region
    %v98 = vld [vmem:[#allocation2] sm:$0xff]
    %v99 = vld [vmem:[#allocation2 + $0x8] sm:$0xff]
    %v100 = vld [vmem:[%s2] sm:$0x1]
    %v102 = vlaneseq
    %v103 = vshrl.u32 %v102, 7
    %v104 = vsub.s32 0, %v103
    %v105 = vrot.slane %v100, %v104
    %v107 = vadd.f32 %v98, %v105
    %v108 = vadd.f32 %v99, %v105
    %v109 = vld [vmem:[%s3] sm:$0xff]
    %v110 = vld [vmem:[%s3 + $0x8] sm:$0xff]
    %v111 = vadd.f32 %v107, %v109
    %v112 = vadd.f32 %v108, %v110
    %113 = vst.msk [vmem:[%s4] sm:$0xff] %vm46, %v111
    %114 = vst.msk [vmem:[%s4 + $0x8] sm:$0xff] %vm46, %v112
  $region25: #{gpt2_forward.13} parent=0 // pred_fallthru
    _
  // Predicated region
  $region26: #{gpt2_forward.13} parent=0 // pred_check
    _
  $region27: #{gpt2_forward.13} parent=0 // pred_check_branch
    %116 = sbr.rel (0) target = $region29
  $region28: #{gpt2_forward.13} parent=0 // pred_region
    _
  $region29: #{gpt2_forward.13} parent=0 // pred_fallthru
    _
  // Predicated region
  $region30: #{gpt2_forward.13} parent=0 // pred_check
    _
  $region31: #{gpt2_forward.13} parent=0 // pred_check_branch
    %118 = sbr.rel (0) target = $region33
  $region32: #{gpt2_forward.13} parent=0 // pred_region
    _
  $region33: #{gpt2_forward.13} parent=0 // pred_fallthru
    _

// kernel: gpt2_forward.12
$region0: #{gpt2_forward.12}
  #allocation0 [shape = 'u32[]', space=smem, size = 0x4, offset = 0x4, fixed_abs, tag = 'smem constant byte address 0x4 - core index']
  #allocation1 [shape = 'u32[144,128]{1,0:T(1,128)}', space=vmem, size = 0x12000, scoped, tag = 'internal scratch']
  #allocation2 [shape = 'f32[8,1]{1,0:T(8,128)}', space=vmem, size = 0x1000, scoped, tag = 'scratch operand']
  #allocation3 [shape = 'f32[8,1]{1,0:T(8,128)}', space=vmem, size = 0x1000, scoped, tag = 'scratch operand']
  #allocation4 [shape = 'f32[8,8]{1,0:T(8,128)}', space=vmem, size = 0x1000, scoped, tag = 'scratch operand']
  %s0 = inlined_call_operand.vmem [shape: f32[8,8,8], index: 0, kind: input, shape index: {}]
  %s1 = inlined_call_operand.vmem [shape: f32[8,8,8], index: 1, kind: input, shape index: {}]
  %s2 = inlined_call_operand.vmem [shape: f32[8,8,8], index: 2, kind: input, shape index: {}]
  %s3 = inlined_call_operand.vmem [shape: f32[8,8,8], index: 3, kind: output, shape index: {}]
  %s4 = sld [smem:[#allocation0]]
  $region57: #{gpt2_forward.12} parent=0
    _
  %s6 = ssub.s32 1, %s4
  %s7 = scalar_select 0, %s6, %s4
  loop: start=0, step=1, limit=10
  $region2: #{gpt2_forward.12} parent=0 // loop_pre_header
    _
  $region3: #{gpt2_forward.12} parent=0 // loop_header
    %s9 = sphi 0, %s13
    %p10 = scmp.ge.s32.totalorder %s9, 10
    %s16 = sphi 0, %s35
    %s17 = sphi 0, %s31
    %s18 = sphi 0, %s27
    %s19 = sphi 0, %s16
    %s20 = sphi 0, %s17
    %s21 = sphi 0, %s18
    %s22 = sphi 0, %s19
    %s23 = sphi 0, %s20
    %s24 = sphi 0, %s21
    %s40 = sphi 0, %s42
    %s43 = sphi 0, %s40
    %s44 = sphi 0, %s43
    %s60 = sphi 0, %s44
    %s72 = sphi 0, %s74
    %s75 = sphi 0, %s72
    %s76 = sphi 0, %s75
    %s92 = sphi 0, %s76
    %s104 = sphi 0, %s106
    %s107 = sphi 0, %s104
    %s108 = sphi 0, %s107
    %s124 = sphi 0, %s108
    %s132 = sphi 0, %s134
    %s135 = sphi 0, %s132
    %s136 = sphi 0, %s135
    %s152 = sphi 0, %s136
  $region4: #{gpt2_forward.12} parent=0 // loop_header_branch
    %12 = sbr.rel (%p10) target = $region8
  $region5: #{gpt2_forward.12} parent=0 // loop_body
    %s14 = ssub.s32 %s9, 1
    %s15 = ssub.s32 %s9, 2
    %s25 = sadd.s32 1, %s18
    %p26 = scmp.ge.s32.totalorder %s25, 1
    %s27 = scalar_select %p26, 0, %s25
    %s28 = sadd.s32 1, %s17
    %s29 = scalar_select %p26, %s28, %s17
    %p30 = scmp.ge.s32.totalorder %s29, 1
    %s31 = scalar_select %p30, 0, %s29
    %s32 = sadd.s32 1, %s16
    %s33 = scalar_select %p30, %s32, %s16
    %p34 = scmp.ge.s32.totalorder %s33, 8
    %s35 = scalar_select %p34, 0, %s33
    %s36 = ssub.s32 %s16, %s35
    %s37 = ssub.s32 %s17, %s31
    %s38 = sor.u32 %s36, %s37
    %p39 = scmp.eq.s32.totalorder %s38, 0
    %s41 = sadd.s32 %s40, 1
    %s42 = scalar_select %p39, %s40, %s41
    %p45 = pneg %p39
    %p46 = scmp.eq.s32.totalorder %s9, 7
    %p47 = por %p45, %p46
    %p48 = scmp.ne.s32.totalorder %s40, %s43
    %p49 = scmp.eq.s32.totalorder %s9, 0
    %p50 = por %p48, %p49
    %p51 = scmp.ne.s32.totalorder %s40, %s43
    %p52 = scmp.eq.s32.totalorder %s14, 7
    %p53 = por %p51, %p52
    %p54 = scmp.ne.s32.totalorder %s43, %s44
    %p55 = scmp.eq.s32.totalorder %s14, 0
    %p56 = por %p54, %p55
    %p57 = scmp.ne.s32.totalorder %s43, %s44
    %p58 = scmp.eq.s32.totalorder %s15, 7
    %p59 = por %p57, %p58
    %p61 = scmp.ne.s32.totalorder %s44, %s60
    %p62 = scmp.eq.s32.totalorder %s15, 0
    %p63 = por %p61, %p62
    %p64 = scmp.lt.s32.totalorder %s18, %s17
    %s65 = scalar_select %p64, %s18, %s17
    %p66 = scmp.lt.s32.totalorder %s27, %s31
    %s67 = scalar_select %p66, %s27, %s31
    %s68 = ssub.s32 %s16, %s35
    %s69 = ssub.s32 %s65, %s67
    %s70 = sor.u32 %s68, %s69
    %p71 = scmp.eq.s32.totalorder %s70, 0
    %s73 = sadd.s32 %s72, 1
    %s74 = scalar_select %p71, %s72, %s73
    %p77 = pneg %p71
    %p78 = scmp.eq.s32.totalorder %s9, 7
    %p79 = por %p77, %p78
    %p80 = scmp.ne.s32.totalorder %s72, %s75
    %p81 = scmp.eq.s32.totalorder %s9, 0
    %p82 = por %p80, %p81
    %p83 = scmp.ne.s32.totalorder %s72, %s75
    %p84 = scmp.eq.s32.totalorder %s14, 7
    %p85 = por %p83, %p84
    %p86 = scmp.ne.s32.totalorder %s75, %s76
    %p87 = scmp.eq.s32.totalorder %s14, 0
    %p88 = por %p86, %p87
    %p89 = scmp.ne.s32.totalorder %s75, %s76
    %p90 = scmp.eq.s32.totalorder %s15, 7
    %p91 = por %p89, %p90
    %p93 = scmp.ne.s32.totalorder %s76, %s92
    %p94 = scmp.eq.s32.totalorder %s15, 0
    %p95 = por %p93, %p94
    %p96 = scmp.lt.s32.totalorder %s18, %s17
    %s97 = scalar_select %p96, %s18, %s17
    %p98 = scmp.lt.s32.totalorder %s27, %s31
    %s99 = scalar_select %p98, %s27, %s31
    %s100 = ssub.s32 %s16, %s35
    %s101 = ssub.s32 %s97, %s99
    %s102 = sor.u32 %s100, %s101
    %p103 = scmp.eq.s32.totalorder %s102, 0
    %s105 = sadd.s32 %s104, 1
    %s106 = scalar_select %p103, %s104, %s105
    %p109 = pneg %p103
    %p110 = scmp.eq.s32.totalorder %s9, 7
    %p111 = por %p109, %p110
    %p112 = scmp.ne.s32.totalorder %s104, %s107
    %p113 = scmp.eq.s32.totalorder %s9, 0
    %p114 = por %p112, %p113
    %p115 = scmp.ne.s32.totalorder %s104, %s107
    %p116 = scmp.eq.s32.totalorder %s14, 7
    %p117 = por %p115, %p116
    %p118 = scmp.ne.s32.totalorder %s107, %s108
    %p119 = scmp.eq.s32.totalorder %s14, 0
    %p120 = por %p118, %p119
    %p121 = scmp.ne.s32.totalorder %s107, %s108
    %p122 = scmp.eq.s32.totalorder %s15, 7
    %p123 = por %p121, %p122
    %p125 = scmp.ne.s32.totalorder %s108, %s124
    %p126 = scmp.eq.s32.totalorder %s15, 0
    %p127 = por %p125, %p126
    %s128 = ssub.s32 %s16, %s35
    %s129 = ssub.s32 %s17, %s31
    %s130 = sor.u32 %s128, %s129
    %p131 = scmp.eq.s32.totalorder %s130, 0
    %s133 = sadd.s32 %s132, 1
    %s134 = scalar_select %p131, %s132, %s133
    %p137 = pneg %p131
    %p138 = scmp.eq.s32.totalorder %s9, 7
    %p139 = por %p137, %p138
    %p140 = scmp.ne.s32.totalorder %s132, %s135
    %p141 = scmp.eq.s32.totalorder %s9, 0
    %p142 = por %p140, %p141
    %p143 = scmp.ne.s32.totalorder %s132, %s135
    %p144 = scmp.eq.s32.totalorder %s14, 7
    %p145 = por %p143, %p144
    %p146 = scmp.ne.s32.totalorder %s135, %s136
    %p147 = scmp.eq.s32.totalorder %s14, 0
    %p148 = por %p146, %p147
    %p149 = scmp.ne.s32.totalorder %s135, %s136
    %p150 = scmp.eq.s32.totalorder %s15, 7
    %p151 = por %p149, %p150
    %p153 = scmp.ne.s32.totalorder %s136, %s152
    %p154 = scmp.eq.s32.totalorder %s15, 0
    %p155 = por %p153, %p154
    %p156 = scmp.le.s32.totalorder 1, %s9
    %p157 = scmp.lt.s32.totalorder %s9, 9
    %p158 = pnand %p156, %p157
    %p159 = pneg %p158
    // Predicated region
    $region9: #{gpt2_forward.12} parent=5 // pred_check
      _
    $region10: #{gpt2_forward.12} parent=5 // pred_check_branch
      %161 = sbr.rel (%p158) target = $region12
    $region11: #{gpt2_forward.12} parent=5 // pred_region
      %s162 = ssub.s32 %s9, 1
    $region12: #{gpt2_forward.12} parent=5 // pred_fallthru
      _
    %p163 = scmp.lt.s32.totalorder %s9, 8
    // Predicated region
    $region13: #{gpt2_forward.12} parent=5 // pred_check
      %p164 = pneg %p163
    $region14: #{gpt2_forward.12} parent=5 // pred_check_branch
      %166 = sbr.rel (%p164) target = $region16
    $region15: #{gpt2_forward.12} parent=5 // pred_region
      // Predicated region
      $region17: #{gpt2_forward.12} parent=15 // pred_check
        %p167 = pneg %p50
      $region18: #{gpt2_forward.12} parent=15 // pred_check_branch
        %169 = sbr.rel (%p167) target = $region20
      $region19: #{gpt2_forward.12} parent=15 // pred_region
        %p170 = scmp.lt.s32.totalorder %s16, 7
        %s171 = scalar_select %p170, %s16, 7
        %p172 = scmp.lt.s32.totalorder %s17, 0
        %s173 = scalar_select %p172, %s17, 0
        %s174 = sadd.s32 %s173, %s171
        %s175 = smul.addr %s174, 8
        %s176 = scalar_lea.vmem %s0, %s175
      $region20: #{gpt2_forward.12} parent=15 // pred_fallthru
        _
      // Predicated region
      $region21: #{gpt2_forward.12} parent=15 // pred_check
        %p177 = pneg %p82
      $region22: #{gpt2_forward.12} parent=15 // pred_check_branch
        %179 = sbr.rel (%p177) target = $region24
      $region23: #{gpt2_forward.12} parent=15 // pred_region
        %p180 = scmp.lt.s32.totalorder %s18, %s17
        %s181 = scalar_select %p180, %s18, %s17
        %p182 = scmp.lt.s32.totalorder %s16, 7
        %s183 = scalar_select %p182, %s16, 7
        %p184 = scmp.lt.s32.totalorder %s181, 0
        %s185 = scalar_select %p184, %s181, 0
        %s186 = sadd.s32 %s185, %s183
        %s187 = smul.addr %s186, 8
        %s188 = scalar_lea.vmem %s1, %s187
        %p189 = scmp.lt.s32.totalorder %s18, %s17
        %s190 = scalar_select %p189, %s18, %s17
      $region24: #{gpt2_forward.12} parent=15 // pred_fallthru
        _
      // Predicated region
      $region25: #{gpt2_forward.12} parent=15 // pred_check
        %p191 = pneg %p114
      $region26: #{gpt2_forward.12} parent=15 // pred_check_branch
        %193 = sbr.rel (%p191) target = $region28
      $region27: #{gpt2_forward.12} parent=15 // pred_region
        %p194 = scmp.lt.s32.totalorder %s18, %s17
        %s195 = scalar_select %p194, %s18, %s17
        %p196 = scmp.lt.s32.totalorder %s16, 7
        %s197 = scalar_select %p196, %s16, 7
        %p198 = scmp.lt.s32.totalorder %s195, 0
        %s199 = scalar_select %p198, %s195, 0
        %s200 = sadd.s32 %s199, %s197
        %s201 = smul.addr %s200, 8
        %s202 = scalar_lea.vmem %s2, %s201
        %p203 = scmp.lt.s32.totalorder %s18, %s17
        %s204 = scalar_select %p203, %s18, %s17
      $region28: #{gpt2_forward.12} parent=15 // pred_fallthru
        _
    $region16: #{gpt2_forward.12} parent=5 // pred_fallthru
      _
    %p205 = scmp.le.s32.totalorder 1, %s9
    %p206 = scmp.lt.s32.totalorder %s9, 9
    %p207 = pnand %p205, %p206
    %p208 = pneg %p207
    // Predicated region
    $region29: #{gpt2_forward.12} parent=5 // pred_check
      _
    $region30: #{gpt2_forward.12} parent=5 // pred_check_branch
      %210 = sbr.rel (%p207) target = $region32
    $region31: #{gpt2_forward.12} parent=5 // pred_region
      %s211 = ssub.s32 %s9, 1
      %p212 = scmp.lt.s32.totalorder %s19, 7
      %s213 = scalar_select %p212, %s19, 7
      %p214 = scmp.lt.s32.totalorder %s20, 0
      %s215 = scalar_select %p214, %s20, 0
      %s216 = sadd.s32 %s215, %s213
      %s217 = smul.addr %s216, 8
      %s218 = scalar_lea.vmem %s0, %s217
      %p219 = pneg %p56
      %p220 = pneg %p53
      %p221 = scmp.lt.s32.totalorder %s21, %s20
      %s222 = scalar_select %p221, %s21, %s20
      %p223 = scmp.lt.s32.totalorder %s19, 7
      %s224 = scalar_select %p223, %s19, 7
      %p225 = scmp.lt.s32.totalorder %s222, 0
      %s226 = scalar_select %p225, %s222, 0
      %s227 = sadd.s32 %s226, %s224
      %s228 = smul.addr %s227, 8
      %s229 = scalar_lea.vmem %s1, %s228
      %p230 = pneg %p88
      %p231 = pneg %p85
      %p232 = scmp.lt.s32.totalorder %s21, %s20
      %s233 = scalar_select %p232, %s21, %s20
      %p234 = scmp.lt.s32.totalorder %s19, 7
      %s235 = scalar_select %p234, %s19, 7
      %p236 = scmp.lt.s32.totalorder %s233, 0
      %s237 = scalar_select %p236, %s233, 0
      %s238 = sadd.s32 %s237, %s235
      %s239 = smul.addr %s238, 8
      %s240 = scalar_lea.vmem %s2, %s239
      %p241 = pneg %p120
      %p242 = pneg %p117
      %p243 = pneg %p148
      %p244 = pneg %p145
      %p245 = scmp.lt.s32.totalorder %s19, 7
      %s246 = scalar_select %p245, %s19, 7
      %p247 = scmp.lt.s32.totalorder %s20, 0
      %s248 = scalar_select %p247, %s20, 0
      %s249 = sadd.s32 %s248, %s246
      %s250 = smul.addr %s249, 8
      %s251 = scalar_lea.vmem %s3, %s250
      %p252 = scmp.lt.s32.totalorder %s19, 7
      %s253 = scalar_select %p252, %s19, 7
      %p254 = scmp.lt.s32.totalorder %s20, 0
      %s255 = scalar_select %p254, %s20, 0
      %s256 = sadd.s32 %s255, %s253
      %s257 = smul.addr %s256, 8
      %s258 = scalar_lea.vmem %s0, %s257
      %p259 = scmp.lt.s32.totalorder %s21, %s20
      %s260 = scalar_select %p259, %s21, %s20
      %p261 = scmp.lt.s32.totalorder %s19, 7
      %s262 = scalar_select %p261, %s19, 7
      %p263 = scmp.lt.s32.totalorder %s260, 0
      %s264 = scalar_select %p263, %s260, 0
      %s265 = sadd.s32 %s264, %s262
      %s266 = smul.addr %s265, 8
      %s267 = scalar_lea.vmem %s1, %s266
      %p268 = scmp.lt.s32.totalorder %s21, %s20
      %s269 = scalar_select %p268, %s21, %s20
      %p270 = scmp.lt.s32.totalorder %s21, %s20
      %s271 = scalar_select %p270, %s21, %s20
      %p272 = scmp.lt.s32.totalorder %s19, 7
      %s273 = scalar_select %p272, %s19, 7
      %p274 = scmp.lt.s32.totalorder %s271, 0
      %s275 = scalar_select %p274, %s271, 0
      %s276 = sadd.s32 %s275, %s273
      %s277 = smul.addr %s276, 8
      %s278 = scalar_lea.vmem %s2, %s277
      %p279 = scmp.lt.s32.totalorder %s21, %s20
      %s280 = scalar_select %p279, %s21, %s20
      %p281 = scmp.lt.s32.totalorder %s19, 7
      %s282 = scalar_select %p281, %s19, 7
      %p283 = scmp.lt.s32.totalorder %s20, 0
      %s284 = scalar_select %p283, %s20, 0
      %s285 = sadd.s32 %s284, %s282
      %s286 = smul.addr %s285, 8
      %s287 = scalar_lea.vmem %s3, %s286
      %p289 = scmp.eq.s32.totalorder %s21, 0
      // Predicated region
      $region33: #{gpt2_forward.12} parent=31 // pred_check
        %p290 = pneg %p289
      $region34: #{gpt2_forward.12} parent=31 // pred_check_branch
        %292 = sbr.rel (%p290) target = $region36
      $region35: #{gpt2_forward.12} parent=31 // pred_region
        %vm293 = vcmask 7168
        %294 = vst.msk [vmem:[#allocation2] sm:$0xff] %vm293, -1e+30
        %295 = vst.msk [vmem:[#allocation3] sm:$0xff] %vm293, 0.0
        %vm296 = vcmask 64512
        %297 = vst.msk [vmem:[#allocation4] sm:$0xff] %vm296, 0.0
      $region36: #{gpt2_forward.12} parent=31 // pred_fallthru
        _
      %p298 = scmp.le.s32.totalorder %s21, %s20
      // Predicated region
      $region37: #{gpt2_forward.12} parent=31 // pred_check
        %p299 = pneg %p298
      $region38: #{gpt2_forward.12} parent=31 // pred_check_branch
        %301 = sbr.rel (%p299) target = $region40
      $region39: #{gpt2_forward.12} parent=31 // pred_region
        %v302 = vld [vmem:[%s258] sm:$0xff]
        %v303 = vpack.c.bf16 %v302, %v302
        %v304 = vld [vmem:[%s267] sm:$0xff]
        %v305 = vpack.c.bf16 %v304, %v304
        %v306 = vld [vmem:[%s278] sm:$0xff]
        %v307 = vpack.c.bf16 %v306, %v306
        %vm308 = vcmask 64512
        %v310 = vsel %vm308, %v303, 0
        %v313 = vsel %vm308, %v305, 0
        %315 = vmatprep.subr.bf16.mxu0 0
        %316 = vmatpush1.bf16.xpose.msra.mxu0 %v313
        %317 = vmatprep.subr.bf16.mxu0 0
        %318 = vmatpush1.bf16.xpose.msra.mxu0 0
        %319 = vmatprep.subr.bf16.mxu0 0
        %320 = vmatpush1.bf16.xpose.msra.mxu0 0
        %321 = vmatprep.subr.bf16.mxu0 0
        %322 = vmatpush1.bf16.xpose.msra.mxu0 0
        %323 = vmatprep.subr.bf16.mxu0 0
        %324 = vmatpush1.bf16.xpose.msra.mxu0 0
        %325 = vmatprep.subr.bf16.mxu0 0
        %326 = vmatpush1.bf16.xpose.msra.mxu0 0
        %327 = vmatprep.subr.bf16.mxu0 0
        %328 = vmatpush1.bf16.xpose.msra.mxu0 0
        %329 = vmatprep.subr.bf16.mxu0 0
        %330 = vmatpush1.bf16.xpose.msra.mxu0 0
        %331 = vmatprep.subr.bf16.mxu0 0
        %332 = vmatpush1.bf16.xpose.msra.mxu0 0
        %333 = vmatprep.subr.bf16.mxu0 0
        %334 = vmatpush1.bf16.xpose.msra.mxu0 0
        %335 = vmatprep.subr.bf16.mxu0 0
        %336 = vmatpush1.bf16.xpose.msra.mxu0 0
        %337 = vmatprep.subr.bf16.mxu0 0
        %338 = vmatpush1.bf16.xpose.msra.mxu0 0
        %339 = vmatprep.subr.bf16.mxu0 0
        %340 = vmatpush1.bf16.xpose.msra.mxu0 0
        %341 = vmatprep.subr.bf16.mxu0 0
        %342 = vmatpush1.bf16.xpose.msra.mxu0 0
        %343 = vmatprep.subr.bf16.mxu0 0
        %344 = vmatpush1.bf16.xpose.msra.mxu0 0
        %345 = vmatprep.subr.bf16.mxu0 0
        %346 = vmatpush1.bf16.xpose.msra.mxu0 0
        %347 = vmatprep.mubr.bf16.mxu0 0
        %348 = vmatmul.mubr.bf16.gmra.mrb[0].mxu0 %v310
        %v349 = vpop.f32.mrb[0].mxu0
        %v350 = vadd.f32 0.0, %v349
        %v351 = vpop.f32.mrb[0].mxu0
        %v352 = vpop.f32.mrb[0].mxu0
        %v353 = vpop.f32.mrb[0].mxu0
        %354 = vdwg.mxu0
        %v355 = vmul.f32 %v350, 0.35355338
        %s356 = smul.u32 %s20, 8
        %v357 = vlaneseq
        %v358 = vshrl.u32 %v357, 7
        %v359 = vstv %s356
        %v360 = vadd.s32 %v359, %v358
        %s361 = smul.u32 %s21, 8
        %v362 = vlaneseq
        %v363 = vand.u32 %v362, 127
        %v364 = vstv %s361
        %v365 = vadd.s32 %v364, %v363
        %vm366 = vcmp.le.s32.totalorder %v365, %v360
        %v367 = vsel %vm366, %v355, -1e+30
        %v368 = vld [vmem:[#allocation2] sm:$0xff]
        %v369 = vsel %vm308, %v367, -inf
        %370 = vmax.xlane.f32.xlu0 %v369
        %v371 = vpop.xlane.xlu0 %370
        %v372 = vmax.f32 %v368, %v371
        %v373 = vsub.f32 %v368, %v372
        %v374 = vmul.f32 %v373, 1.442695
        %v375 = vpow.pop %v374
        %377 = vset.pattern.permute.xlu0 0
        %378 = vperm.xlu0 %377, %v372
        %v379 = vpop.permute.xlu0 %378
        %v381 = vsub.f32 %v367, %v379
        %v382 = vmul.f32 %v381, 1.442695
        %v383 = vpow.pop %v382
        %v384 = vld [vmem:[#allocation3] sm:$0xff]
        %v385 = vmul.f32 %v375, %v384
        %v386 = vsel %vm308, %v383, 0.0
        %387 = vadd.xlane.f32.xlu0 %v386
        %v388 = vpop.xlane.xlu0 %387
        %v389 = vadd.f32 %v385, %v388
        %vm390 = vcmask 7168
        %391 = vst.msk [vmem:[#allocation3] sm:$0xff] %vm390, %v389
        %v392 = vld [vmem:[#allocation4] sm:$0xff]
        %394 = vset.pattern.permute.xlu0 0
        %395 = vperm.xlu0 %394, %v375
        %v396 = vpop.permute.xlu0 %395
        %v398 = vmul.f32 %v396, %v392
        %v399 = vpack.c.bf16 %v383, %v383
        %v401 = vsel %vm308, %v399, 0
        %vm403 = vcmask 1043456
        %v405 = vsel %vm403, %v307, 0
        %407 = vmatprep.subr.bf16.mxu0 0
        %408 = vmatpush1.bf16.msra.mxu0 %v405
        %409 = vmatprep.subr.bf16.mxu0 0
        %410 = vmatpush1.bf16.msra.mxu0 0
        %411 = vmatprep.subr.bf16.mxu0 0
        %412 = vmatpush1.bf16.msra.mxu0 0
        %413 = vmatprep.subr.bf16.mxu0 0
        %414 = vmatpush1.bf16.msra.mxu0 0
        %415 = vmatprep.subr.bf16.mxu0 0
        %416 = vmatpush1.bf16.msra.mxu0 0
        %417 = vmatprep.subr.bf16.mxu0 0
        %418 = vmatpush1.bf16.msra.mxu0 0
        %419 = vmatprep.subr.bf16.mxu0 0
        %420 = vmatpush1.bf16.msra.mxu0 0
        %421 = vmatprep.subr.bf16.mxu0 0
        %422 = vmatpush1.bf16.msra.mxu0 0
        %423 = vmatprep.subr.bf16.mxu0 0
        %424 = vmatpush1.bf16.msra.mxu0 0
        %425 = vmatprep.subr.bf16.mxu0 0
        %426 = vmatpush1.bf16.msra.mxu0 0
        %427 = vmatprep.subr.bf16.mxu0 0
        %428 = vmatpush1.bf16.msra.mxu0 0
        %429 = vmatprep.subr.bf16.mxu0 0
        %430 = vmatpush1.bf16.msra.mxu0 0
        %431 = vmatprep.subr.bf16.mxu0 0
        %432 = vmatpush1.bf16.msra.mxu0 0
        %433 = vmatprep.subr.bf16.mxu0 0
        %434 = vmatpush1.bf16.msra.mxu0 0
        %435 = vmatprep.subr.bf16.mxu0 0
        %436 = vmatpush1.bf16.msra.mxu0 0
        %437 = vmatprep.subr.bf16.mxu0 0
        %438 = vmatpush1.bf16.msra.mxu0 0
        %439 = vmatprep.mubr.bf16.mxu0 0
        %440 = vmatmul.mubr.bf16.gmra.mrb[0].mxu0 %v401
        %v441 = vpop.f32.mrb[0].mxu0
        %v442 = vadd.f32 0.0, %v441
        %v443 = vpop.f32.mrb[0].mxu0
        %v444 = vpop.f32.mrb[0].mxu0
        %v445 = vpop.f32.mrb[0].mxu0
        %446 = vdwg.mxu0
        %v447 = vadd.f32 %v398, %v442
        %448 = vst.msk [vmem:[#allocation4] sm:$0xff] %vm308, %v447
        %449 = vst.msk [vmem:[#allocation2] sm:$0xff] %vm390, %v372
      $region40: #{gpt2_forward.12} parent=31 // pred_fallthru
        _
      %p450 = scmp.eq.s32.totalorder %s21, %s20
      // Predicated region
      $region41: #{gpt2_forward.12} parent=31 // pred_check
        %p451 = pneg %p450
      $region42: #{gpt2_forward.12} parent=31 // pred_check_branch
        %453 = sbr.rel (%p451) target = $region44
      $region43: #{gpt2_forward.12} parent=31 // pred_region
        %v454 = vld [vmem:[#allocation3] sm:$0xff]
        %v455 = vrcp.pop %v454
        %v456 = vld [vmem:[#allocation4] sm:$0xff]
        %458 = vset.pattern.permute.xlu0 0
        %459 = vperm.xlu0 %458, %v455
        %v460 = vpop.permute.xlu0 %459
        %v462 = vmul.f32 %v456, %v460
        %vm463 = vcmask 64512
        %464 = vst.msk [vmem:[%s287] sm:$0xff] %vm463, %v462
      $region44: #{gpt2_forward.12} parent=31 // pred_fallthru
        _
      %p465 = scmp.lt.s32.totalorder %s19, 7
      %s466 = scalar_select %p465, %s19, 7
      %p467 = scmp.lt.s32.totalorder %s20, 0
      %s468 = scalar_select %p467, %s20, 0
      %s469 = sadd.s32 %s468, %s466
      %s470 = smul.addr %s469, 8
      %s471 = scalar_lea.vmem %s3, %s470
      // Predicated region
      $region45: #{gpt2_forward.12} parent=31 // pred_check
        %p472 = pneg %p145
      $region46: #{gpt2_forward.12} parent=31 // pred_check_branch
        %474 = sbr.rel (%p472) target = $region48
      $region47: #{gpt2_forward.12} parent=31 // pred_region
        _
      $region48: #{gpt2_forward.12} parent=31 // pred_fallthru
        _
    $region32: #{gpt2_forward.12} parent=5 // pred_fallthru
      _
    %p475 = scmp.le.s32.totalorder 2, %s9
    // Predicated region
    $region49: #{gpt2_forward.12} parent=5 // pred_check
      %p476 = pneg %p475
    $region50: #{gpt2_forward.12} parent=5 // pred_check_branch
      %478 = sbr.rel (%p476) target = $region52
    $region51: #{gpt2_forward.12} parent=5 // pred_region
      %s479 = ssub.s32 %s9, 2
      // Predicated region
      $region53: #{gpt2_forward.12} parent=51 // pred_check
        %p480 = pneg %p151
      $region54: #{gpt2_forward.12} parent=51 // pred_check_branch
        %482 = sbr.rel (%p480) target = $region56
      $region55: #{gpt2_forward.12} parent=51 // pred_region
        %p483 = scmp.lt.s32.totalorder %s22, 7
        %s484 = scalar_select %p483, %s22, 7
        %p485 = scmp.lt.s32.totalorder %s23, 0
        %s486 = scalar_select %p485, %s23, 0
        %s487 = sadd.s32 %s486, %s484
        %s488 = smul.addr %s487, 8
        %s489 = scalar_lea.vmem %s3, %s488
      $region56: #{gpt2_forward.12} parent=51 // pred_fallthru
        _
    $region52: #{gpt2_forward.12} parent=5 // pred_fallthru
      _
  $region6: #{gpt2_forward.12} parent=0 // loop_footer
    %s13 = sadd.s32 1, %s9
  $region7: #{gpt2_forward.12} parent=0 // loop_footer_branch
    %8 = sbr.rel target = $region3
  $region8: #{gpt2_forward.12} parent=0 // loop_exit
    _

// kernel: gpt2_forward.15
$region0: #{gpt2_forward.15}
  #allocation0 [shape = 'u32[]', space=smem, size = 0x4, offset = 0x4, fixed_abs, tag = 'smem constant byte address 0x4 - core index']
  #allocation1 [shape = 'u32[144,128]{1,0:T(1,128)}', space=vmem, size = 0x12000, scoped, tag = 'internal scratch']
  #allocation2 [shape = 'f32[16,32]{1,0:T(8,128)}', space=vmem, size = 0x2000, scoped, tag = 'scratch operand']
  %s0 = inlined_call_operand.vmem [shape: f32[16,128], index: 0, kind: input, shape index: {}]
  %s1 = inlined_call_operand.vmem [shape: bf16[128,32], index: 1, kind: input, shape index: {}]
  %s2 = inlined_call_operand.vmem [shape: f32[1,32], index: 2, kind: input, shape index: {}]
  %s3 = inlined_call_operand.vmem [shape: f32[16,32], index: 3, kind: input, shape index: {}]
  %s4 = inlined_call_operand.vmem [shape: f32[16,32], index: 4, kind: output, shape index: {}]
  %s5 = sld [smem:[#allocation0]]
  $region34: #{gpt2_forward.15} parent=0
    _
  %s7 = ssub.s32 1, %s5
  %s8 = scalar_select 0, %s7, %s5
  // Predicated region
  $region2: #{gpt2_forward.15} parent=0 // pred_check
    _
  $region3: #{gpt2_forward.15} parent=0 // pred_check_branch
    %10 = sbr.rel (0) target = $region5
  $region4: #{gpt2_forward.15} parent=0 // pred_region
    _
  $region5: #{gpt2_forward.15} parent=0 // pred_fallthru
    _
  // Predicated region
  $region6: #{gpt2_forward.15} parent=0 // pred_check
    _
  $region7: #{gpt2_forward.15} parent=0 // pred_check_branch
    %12 = sbr.rel (0) target = $region9
  $region8: #{gpt2_forward.15} parent=0 // pred_region
    _
  $region9: #{gpt2_forward.15} parent=0 // pred_fallthru
    _
  // Predicated region
  $region10: #{gpt2_forward.15} parent=0 // pred_check
    _
  $region11: #{gpt2_forward.15} parent=0 // pred_check_branch
    %14 = sbr.rel (0) target = $region13
  $region12: #{gpt2_forward.15} parent=0 // pred_region
    _
  $region13: #{gpt2_forward.15} parent=0 // pred_fallthru
    _
  // Predicated region
  $region14: #{gpt2_forward.15} parent=0 // pred_check
    _
  $region15: #{gpt2_forward.15} parent=0 // pred_check_branch
    %16 = sbr.rel (0) target = $region17
  $region16: #{gpt2_forward.15} parent=0 // pred_region
    _
  $region17: #{gpt2_forward.15} parent=0 // pred_fallthru
    _
  %p18 = scmp.eq.s32.totalorder 0, 0
  // Predicated region
  $region18: #{gpt2_forward.15} parent=0 // pred_check
    %p19 = pneg %p18
  $region19: #{gpt2_forward.15} parent=0 // pred_check_branch
    %21 = sbr.rel (%p19) target = $region21
  $region20: #{gpt2_forward.15} parent=0 // pred_region
    %vm22 = vcmask 261120
    %23 = vst.msk [vmem:[#allocation2] sm:$0xff] %vm22, 0.0
    %24 = vst.msk [vmem:[#allocation2 + $0x8] sm:$0xff] %vm22, 0.0
  $region21: #{gpt2_forward.15} parent=0 // pred_fallthru
    _
  %v25 = vld [vmem:[#allocation2] sm:$0xff]
  %v26 = vld [vmem:[#allocation2 + $0x8] sm:$0xff]
  %v27 = vld [vmem:[%s0] sm:$0xff]
  %v28 = vld [vmem:[%s0 + $0x8] sm:$0xff]
  %v29 = vpack.c.bf16 %v28, %v27
  %v30 = vld [vmem:[%s1] sm:$0xf]
  %v31 = vld [vmem:[%s1 + $0x4] sm:$0xf]
  %v32 = vld [vmem:[%s1 + $0x8] sm:$0xf]
  %v33 = vld [vmem:[%s1 + $0xc] sm:$0xf]
  %v34 = vld [vmem:[%s1 + $0x10] sm:$0xf]
  %v35 = vld [vmem:[%s1 + $0x14] sm:$0xf]
  %v36 = vld [vmem:[%s1 + $0x18] sm:$0xf]
  %v37 = vld [vmem:[%s1 + $0x1c] sm:$0xf]
  %v38 = vld [vmem:[%s1 + $0x20] sm:$0xf]
  %v39 = vld [vmem:[%s1 + $0x24] sm:$0xf]
  %v40 = vld [vmem:[%s1 + $0x28] sm:$0xf]
  %v41 = vld [vmem:[%s1 + $0x2c] sm:$0xf]
  %v42 = vld [vmem:[%s1 + $0x30] sm:$0xf]
  %v43 = vld [vmem:[%s1 + $0x34] sm:$0xf]
  %v44 = vld [vmem:[%s1 + $0x38] sm:$0xf]
  %v45 = vld [vmem:[%s1 + $0x3c] sm:$0xf]
  %v62 = vunpack.c.l.b16 %v30
  %v63 = vunpack.c.l.b16 %v31
  %v64 = vunpack.c.l.b16 %v32
  %v65 = vunpack.c.l.b16 %v33
  %v66 = vunpack.c.l.b16 %v34
  %v67 = vunpack.c.l.b16 %v35
  %v68 = vunpack.c.l.b16 %v36
  %v69 = vunpack.c.l.b16 %v37
  %v70 = vunpack.c.l.b16 %v38
  %v71 = vunpack.c.l.b16 %v39
  %v72 = vunpack.c.l.b16 %v40
  %v73 = vunpack.c.l.b16 %v41
  %v74 = vunpack.c.l.b16 %v42
  %v75 = vunpack.c.l.b16 %v43
  %v76 = vunpack.c.l.b16 %v44
  %v77 = vunpack.c.l.b16 %v45
  %v78 = vpack.c.b16 %v63, %v62
  %v79 = vpack.c.b16 %v65, %v64
  %v80 = vpack.c.b16 %v67, %v66
  %v81 = vpack.c.b16 %v69, %v68
  %v82 = vpack.c.b16 %v71, %v70
  %v83 = vpack.c.b16 %v73, %v72
  %v84 = vpack.c.b16 %v75, %v74
  %v85 = vpack.c.b16 %v77, %v76
  %94 = vmatprep.subr.bf16.mxu0 0
  %95 = vmatpush1.bf16.msra.mxu0 %v78
  %96 = vmatprep.subr.bf16.mxu0 0
  %97 = vmatpush1.bf16.msra.mxu0 %v79
  %98 = vmatprep.subr.bf16.mxu0 0
  %99 = vmatpush1.bf16.msra.mxu0 %v80
  %100 = vmatprep.subr.bf16.mxu0 0
  %101 = vmatpush1.bf16.msra.mxu0 %v81
  %102 = vmatprep.subr.bf16.mxu0 0
  %103 = vmatpush1.bf16.msra.mxu0 %v82
  %104 = vmatprep.subr.bf16.mxu0 0
  %105 = vmatpush1.bf16.msra.mxu0 %v83
  %106 = vmatprep.subr.bf16.mxu0 0
  %107 = vmatpush1.bf16.msra.mxu0 %v84
  %108 = vmatprep.subr.bf16.mxu0 0
  %109 = vmatpush1.bf16.msra.mxu0 %v85
  %110 = vmatprep.subr.bf16.mxu0 0
  %111 = vmatpush1.bf16.msra.mxu0 0
  %112 = vmatprep.subr.bf16.mxu0 0
  %113 = vmatpush1.bf16.msra.mxu0 0
  %114 = vmatprep.subr.bf16.mxu0 0
  %115 = vmatpush1.bf16.msra.mxu0 0
  %116 = vmatprep.subr.bf16.mxu0 0
  %117 = vmatpush1.bf16.msra.mxu0 0
  %118 = vmatprep.subr.bf16.mxu0 0
  %119 = vmatpush1.bf16.msra.mxu0 0
  %120 = vmatprep.subr.bf16.mxu0 0
  %121 = vmatpush1.bf16.msra.mxu0 0
  %122 = vmatprep.subr.bf16.mxu0 0
  %123 = vmatpush1.bf16.msra.mxu0 0
  %124 = vmatprep.subr.bf16.mxu0 0
  %125 = vmatpush1.bf16.msra.mxu0 0
  %126 = vmatprep.mubr.bf16.mxu0 0
  %127 = vmatmul.mubr.bf16.gmra.mrb[0].mxu0 %v29
  %v128 = vpop.f32.mrb[0].mxu0
  %v129 = vadd.f32 0.0, %v128
  %v130 = vpop.f32.mrb[0].mxu0
  %v131 = vpop.f32.mrb[0].mxu0
  %v132 = vadd.f32 0.0, %v131
  %v133 = vpop.f32.mrb[0].mxu0
  %134 = vdwg.mxu0
  %v135 = vadd.f32 %v25, %v129
  %v136 = vadd.f32 %v26, %v132
  %vm137 = vcmask 261120
  %138 = vst.msk [vmem:[#allocation2] sm:$0xff] %vm137, %v135
  %139 = vst.msk [vmem:[#allocation2 + $0x8] sm:$0xff] %vm137, %v136
  // Predicated region
  $region22: #{gpt2_forward.15} parent=0 // pred_check
    %p140 = pneg %p18
  $region23: #{gpt2_forward.15} parent=0 // pred_check_branch
    %142 = sbr.rel (%p140) target = $region25
  $region24: #{gpt2_forward.15} parent=0 // pred_region
    %v143 = vld [vmem:[#allocation2] sm:$0xff]
    %v144 = vld [vmem:[#allocation2 + $0x8] sm:$0xff]
    %v145 = vld [vmem:[%s2] sm:$0x1]
    %v147 = vlaneseq
    %v148 = vshrl.u32 %v147, 7
    %v149 = vsub.s32 0, %v148
    %v150 = vrot.slane %v145, %v149
    %v152 = vadd.f32 %v143, %v150
    %v153 = vadd.f32 %v144, %v150
    %v154 = vld [vmem:[%s3] sm:$0xff]
    %v155 = vld [vmem:[%s3 + $0x8] sm:$0xff]
    %v156 = vadd.f32 %v152, %v154
    %v157 = vadd.f32 %v153, %v155
    %158 = vst.msk [vmem:[%s4] sm:$0xff] %vm137, %v156
    %159 = vst.msk [vmem:[%s4 + $0x8] sm:$0xff] %vm137, %v157
  $region25: #{gpt2_forward.15} parent=0 // pred_fallthru
    _
  // Predicated region
  $region26: #{gpt2_forward.15} parent=0 // pred_check
    _
  $region27: #{gpt2_forward.15} parent=0 // pred_check_branch
    %161 = sbr.rel (0) target = $region29
  $region28: #{gpt2_forward.15} parent=0 // pred_region
    _
  $region29: #{gpt2_forward.15} parent=0 // pred_fallthru
    _
  // Predicated region
  $region30: #{gpt2_forward.15} parent=0 // pred_check
    _
  $region31: #{gpt2_forward.15} parent=0 // pred_check_branch
    %163 = sbr.rel (0) target = $region33
  $region32: #{gpt2_forward.15} parent=0 // pred_region
    _
  $region33: #{gpt2_forward.15} parent=0 // pred_fallthru
    _

// kernel: gpt2_forward.21
$region0: #{gpt2_forward.21}
  #allocation0 [shape = 'u32[]', space=smem, size = 0x4, offset = 0x4, fixed_abs, tag = 'smem constant byte address 0x4 - core index']
  #allocation1 [shape = 'u32[144,128]{1,0:T(1,128)}', space=vmem, size = 0x12000, scoped, tag = 'internal scratch']
  %s0 = inlined_call_operand.vmem [shape: f32[16,32], index: 0, kind: input, shape index: {}]
  %s1 = inlined_call_operand.vmem [shape: f32[1,32], index: 1, kind: input, shape index: {}]
  %s2 = inlined_call_operand.vmem [shape: f32[1,32], index: 2, kind: input, shape index: {}]
  %s3 = inlined_call_operand.vmem [shape: f32[128,32], index: 3, kind: input, shape index: {}]
  %s4 = inlined_call_operand.hbm [shape: f32[16,128], index: 4, kind: output, shape index: {}]
  %s5 = sld [smem:[#allocation0]]
  $region26: #{gpt2_forward.21} parent=0
    _
  %s7 = ssub.s32 1, %s5
  %s8 = scalar_select 0, %s7, %s5
  $region1: #{gpt2_forward.21} parent=0
    #allocation2 [shape = 'u8[8192]{0}', space=vmem, size = 0x2000, scoped, tag = 'output window, operand 0, single buffered']
    #allocation3 [shape = 's32[1]{0}', space=sflag, size = 0x4, scoped, tag = 'scoped memory for gpt2_forward.21']
    %9 = vsyncpa [#allocation3], 0
    // Predicated region
    $region2: #{gpt2_forward.21} parent=1 // pred_check
      _
    $region3: #{gpt2_forward.21} parent=1 // pred_check_branch
      %11 = sbr.rel (0) target = $region5
    $region4: #{gpt2_forward.21} parent=1 // pred_region
      _
    $region5: #{gpt2_forward.21} parent=1 // pred_fallthru
      _
    // Predicated region
    $region6: #{gpt2_forward.21} parent=1 // pred_check
      _
    $region7: #{gpt2_forward.21} parent=1 // pred_check_branch
      %13 = sbr.rel (0) target = $region9
    $region8: #{gpt2_forward.21} parent=1 // pred_region
      _
    $region9: #{gpt2_forward.21} parent=1 // pred_fallthru
      _
    // Predicated region
    $region10: #{gpt2_forward.21} parent=1 // pred_check
      _
    $region11: #{gpt2_forward.21} parent=1 // pred_check_branch
      %15 = sbr.rel (0) target = $region13
    $region12: #{gpt2_forward.21} parent=1 // pred_region
      _
    $region13: #{gpt2_forward.21} parent=1 // pred_fallthru
      _
    // Predicated region
    $region14: #{gpt2_forward.21} parent=1 // pred_check
      _
    $region15: #{gpt2_forward.21} parent=1 // pred_check_branch
      %17 = sbr.rel (0) target = $region17
    $region16: #{gpt2_forward.21} parent=1 // pred_region
      _
    $region17: #{gpt2_forward.21} parent=1 // pred_fallthru
      _
    %v19 = vld [vmem:[%s0] sm:$0xff]
    %v20 = vld [vmem:[%s0 + $0x8] sm:$0xff]
    %vm21 = vcmask 261120
    %v22 = vsel %vm21, %v19, 0.0
    %23 = vadd.xlane.f32.xlu0 %v22
    %v24 = vpop.xlane.xlu0 %23
    %v25 = vsel %vm21, %v20, 0.0
    %26 = vadd.xlane.f32.xlu0 %v25
    %v27 = vpop.xlane.xlu0 %26
    %v28 = vrcp.pop 32.0
    %v29 = vmul.f32 %v24, %v28
    %v30 = vmul.f32 %v27, %v28
    %v31 = vsub.f32 %v19, %v29
    %v32 = vsub.f32 %v20, %v30
    %v33 = vmul.f32 %v31, %v31
    %v34 = vmul.f32 %v32, %v32
    %v35 = vsel %vm21, %v33, 0.0
    %36 = vadd.xlane.f32.xlu0 %v35
    %v37 = vpop.xlane.xlu0 %36
    %v38 = vsel %vm21, %v34, 0.0
    %39 = vadd.xlane.f32.xlu0 %v38
    %v40 = vpop.xlane.xlu0 %39
    %v41 = vmul.f32 %v37, %v28
    %v42 = vmul.f32 %v40, %v28
    %v43 = vadd.f32 %v41, 1e-05
    %v44 = vadd.f32 %v42, 1e-05
    %v45 = vrsqrt.pop %v43
    %v46 = vrsqrt.pop %v44
    %v47 = vmul.f32 %v31, %v45
    %v48 = vmul.f32 %v32, %v46
    %v49 = vld [vmem:[%s1] sm:$0x1]
    %v51 = vlaneseq
    %v52 = vshrl.u32 %v51, 7
    %v53 = vsub.s32 0, %v52
    %v54 = vrot.slane %v49, %v53
    %v56 = vmul.f32 %v47, %v54
    %v57 = vmul.f32 %v48, %v54
    %v58 = vld [vmem:[%s2] sm:$0x1]
    %v60 = vlaneseq
    %v61 = vshrl.u32 %v60, 7
    %v62 = vsub.s32 0, %v61
    %v63 = vrot.slane %v58, %v62
    %v65 = vadd.f32 %v56, %v63
    %v66 = vadd.f32 %v57, %v63
    %v67 = vpack.c.bf16 %v66, %v65
    %v68 = vld [vmem:[%s3] sm:$0xff]
    %v69 = vld [vmem:[%s3 + $0x8] sm:$0xff]
    %v70 = vld [vmem:[%s3 + $0x10] sm:$0xff]
    %v71 = vld [vmem:[%s3 + $0x18] sm:$0xff]
    %v72 = vld [vmem:[%s3 + $0x20] sm:$0xff]
    %v73 = vld [vmem:[%s3 + $0x28] sm:$0xff]
    %v74 = vld [vmem:[%s3 + $0x30] sm:$0xff]
    %v75 = vld [vmem:[%s3 + $0x38] sm:$0xff]
    %v76 = vld [vmem:[%s3 + $0x40] sm:$0xff]
    %v77 = vld [vmem:[%s3 + $0x48] sm:$0xff]
    %v78 = vld [vmem:[%s3 + $0x50] sm:$0xff]
    %v79 = vld [vmem:[%s3 + $0x58] sm:$0xff]
    %v80 = vld [vmem:[%s3 + $0x60] sm:$0xff]
    %v81 = vld [vmem:[%s3 + $0x68] sm:$0xff]
    %v82 = vld [vmem:[%s3 + $0x70] sm:$0xff]
    %v83 = vld [vmem:[%s3 + $0x78] sm:$0xff]
    %v84 = vpack.c.bf16 %v69, %v68
    %v85 = vpack.c.bf16 %v71, %v70
    %v86 = vpack.c.bf16 %v73, %v72
    %v87 = vpack.c.bf16 %v75, %v74
    %v88 = vpack.c.bf16 %v77, %v76
    %v89 = vpack.c.bf16 %v79, %v78
    %v90 = vpack.c.bf16 %v81, %v80
    %v91 = vpack.c.bf16 %v83, %v82
    %v93 = vsel %vm21, %v67, 0
    %v96 = vsel %vm21, %v84, 0
    %v99 = vsel %vm21, %v85, 0
    %v102 = vsel %vm21, %v86, 0
    %v105 = vsel %vm21, %v87, 0
    %v108 = vsel %vm21, %v88, 0
    %v111 = vsel %vm21, %v89, 0
    %v114 = vsel %vm21, %v90, 0
    %v117 = vsel %vm21, %v91, 0
    %119 = vmatprep.subr.bf16.mxu0 0
    %120 = vmatpush1.bf16.xpose.msra.mxu0 %v96
    %121 = vmatprep.subr.bf16.mxu0 0
    %122 = vmatpush1.bf16.xpose.msra.mxu0 %v99
    %123 = vmatprep.subr.bf16.mxu0 0
    %124 = vmatpush1.bf16.xpose.msra.mxu0 %v102
    %125 = vmatprep.subr.bf16.mxu0 0
    %126 = vmatpush1.bf16.xpose.msra.mxu0 %v105
    %127 = vmatprep.subr.bf16.mxu0 0
    %128 = vmatpush1.bf16.xpose.msra.mxu0 %v108
    %129 = vmatprep.subr.bf16.mxu0 0
    %130 = vmatpush1.bf16.xpose.msra.mxu0 %v111
    %131 = vmatprep.subr.bf16.mxu0 0
    %132 = vmatpush1.bf16.xpose.msra.mxu0 %v114
    %133 = vmatprep.subr.bf16.mxu0 0
    %134 = vmatpush1.bf16.xpose.msra.mxu0 %v117
    %135 = vmatprep.subr.bf16.mxu0 0
    %136 = vmatpush1.bf16.xpose.msra.mxu0 0
    %137 = vmatprep.subr.bf16.mxu0 0
    %138 = vmatpush1.bf16.xpose.msra.mxu0 0
    %139 = vmatprep.subr.bf16.mxu0 0
    %140 = vmatpush1.bf16.xpose.msra.mxu0 0
    %141 = vmatprep.subr.bf16.mxu0 0
    %142 = vmatpush1.bf16.xpose.msra.mxu0 0
    %143 = vmatprep.subr.bf16.mxu0 0
    %144 = vmatpush1.bf16.xpose.msra.mxu0 0
    %145 = vmatprep.subr.bf16.mxu0 0
    %146 = vmatpush1.bf16.xpose.msra.mxu0 0
    %147 = vmatprep.subr.bf16.mxu0 0
    %148 = vmatpush1.bf16.xpose.msra.mxu0 0
    %149 = vmatprep.subr.bf16.mxu0 0
    %150 = vmatpush1.bf16.xpose.msra.mxu0 0
    %151 = vmatprep.mubr.bf16.mxu0 0
    %152 = vmatmul.mubr.bf16.gmra.mrb[0].mxu0 %v93
    %v153 = vpop.f32.mrb[0].mxu0
    %v154 = vadd.f32 0.0, %v153
    %v155 = vpop.f32.mrb[0].mxu0
    %v156 = vpop.f32.mrb[0].mxu0
    %v157 = vadd.f32 0.0, %v156
    %v158 = vpop.f32.mrb[0].mxu0
    %159 = vdwg.mxu0
    %160 = vst [vmem:[#allocation2] sm:$0xff] %v154
    %161 = vst [vmem:[#allocation2 + $0x8] sm:$0xff] %v157
    // Predicated region
    $region18: #{gpt2_forward.21} parent=1 // pred_check
      _
    $region19: #{gpt2_forward.21} parent=1 // pred_check_branch
      %163 = sbr.rel (0) target = $region21
    $region20: #{gpt2_forward.21} parent=1 // pred_region
      %s165 = ssub.s32 256, 256
      %166 = vsyncadd [#allocation3], %s165
      %s167 = sshll.u32 [#allocation2], 4
      %s168 = int_to_ptr.vmem [resolvable:$true] %s167
      %173 = dma.vmem_to_hbm [thread:$0]  %s168, 256, %s4, [#allocation3], 128, 128, 8
    $region21: #{gpt2_forward.21} parent=1 // pred_fallthru
      _
    // Predicated region
    $region22: #{gpt2_forward.21} parent=1 // pred_check
      _
    $region23: #{gpt2_forward.21} parent=1 // pred_check_branch
      %175 = sbr.rel (0) target = $region25
    $region24: #{gpt2_forward.21} parent=1 // pred_region
      %176 = dma.done [#allocation3], 256
    $region25: #{gpt2_forward.21} parent=1 // pred_fallthru
      _
    %177 = vsyncpa [#allocation3], 1

</llo_original>
